<compile_context>
chip_gen: v5e
topology: v5e:2x2
jax: 0.10.0
libtpu: 0.0.40
codegen_flags: <defaults>
</compile_context>

<pallas_src>
import functools
import math

import numpy as np

import jax
import jax.numpy as jnp
from jax.experimental import pallas as pl
from jax.experimental.pallas import tpu as pltpu


def _rd_conv_kernel(x_ref, w_ref, m_ref, o_ref, xpad_ref, patch_ref, *,
                    H, W, C_in, K, pad, off):
    """One batch element (transposed im2col GEMM).

    x_ref:     (1, C_in, H*W)        NCHW input, spatial flattened (lane axis)
    w_ref:     (C_out_pad, KKC_pad)  dense RD weight, cols ordered (ky, kx, c)
    m_ref:     (K, H*W)              per-kx column-validity masks (0/1)
    o_ref:     (1, C_out_pad, H*W)   NCHW-flattened output (lane-dense)
    xpad_ref:  (C_in, L)             flat row-padded image scratch
    patch_ref: (KKC_pad, H*W)        im2col patches (taps*C_in on sublanes)
    """
    HW = H * W
    KKC = K * K * C_in
    KKC_pad = patch_ref.shape[0]
    L = xpad_ref.shape[1]
    dt = xpad_ref.dtype

    # --- flat padded image: zero only the halo strips, then one aligned store.
    xpad_ref[:, 0:off] = jnp.zeros((C_in, off), dt)
    xpad_ref[:, off + HW:L] = jnp.zeros((C_in, L - off - HW), dt)
    xpad_ref[:, off:off + HW] = x_ref[0]

    # --- zero the KKC -> KKC_pad tail rows so the padded contraction lanes are
    #     well-defined (uninitialized VMEM could hold NaNs; 0 * NaN != 0).
    if KKC_pad > KKC:
        patch_ref[KKC:KKC_pad, :] = jnp.zeros((KKC_pad - KKC, HW), patch_ref.dtype)

    # --- hoist the K column masks (broadcast over C_in once, reused 5x each).
    cmask = [jnp.broadcast_to(m_ref[kx:kx + 1, :], (C_in, HW)) for kx in range(K)]

    # --- transposed im2col: tap (ky, kx) fills C_in full-HW lane-dense rows.
    # Source pixel for output m = h*W + w is xpad[c, off + m + (ky-pad)*W + (kx-pad)];
    # vertical out-of-range hits the zero halo, horizontal wrap is masked per kx.
    for ky in range(K):
        for kx in range(K):
            r0 = (ky * K + kx) * C_in
            st = off + (ky - pad) * W + (kx - pad)
            patch_ref[r0:r0 + C_in, :] = xpad_ref[:, st:st + HW] * cmask[kx]

    # --- single MXU matmul: (C_out_pad, KKC_pad) x (KKC_pad, HW), f32 accum.
    acc = jnp.dot(w_ref[...], patch_ref[...], preferred_element_type=jnp.float32)
    o_ref[0] = acc.astype(o_ref.dtype)


def rd_conv2d(x_nchw, weight_3x3, theta=1.0, compute_dtype=jnp.float32):
    """Forward pass of Conv2d_rd.

    x_nchw:     (N, C_in, H, W)
    weight_3x3: (C_out, C_in, 3, 3)
    Returns (out_nchw, rd_weight_oihw).
    """
    N, C_in, H, W = x_nchw.shape
    C_out = weight_3x3.shape[0]
    K, pad = 5, 2
    HW = H * W

    # ---- build the 5x5 RD weight (plain JAX glue, matches PyTorch scatter) ----
    w_flat = weight_3x3.reshape(C_out, C_in, 9)
    rd = jnp.zeros((C_out, C_in, 25), dtype=weight_3x3.dtype)
    idx_pos = jnp.array([0, 2, 4, 10, 14, 20, 22, 24])
    idx_neg = jnp.array([6, 7, 8, 11, 13, 16, 17, 18])
    rd = rd.at[:, :, idx_pos].set(w_flat[:, :, 1:])
    rd = rd.at[:, :, idx_neg].set(-w_flat[:, :, 1:] * theta)
    rd = rd.at[:, :, 12].set(w_flat[:, :, 0] * (1.0 - theta))
    rd_oihw = rd.reshape(C_out, C_in, K, K)

    if math.fabs(theta - 0.0) < 1e-8:
        # theta == 0 degenerates to a plain 3x3 conv with padding=2 (output is
        # (H+2, W+2), so the constant-stride flat-shift im2col above does not
        # apply); fall back to XLA's conv to keep the module's semantics.
        # TODO(synk): dedicated Pallas path for the theta == 0 branch.
        out = jax.lax.conv_general_dilated(
            x_nchw, weight_3x3, window_strides=(1, 1),
            padding=((2, 2), (2, 2)),
            dimension_numbers=("NCHW", "OIHW", "NCHW"))
        return out, rd_oihw

    # ---- dense (C_out_pad, KKC_pad) weight, columns ordered (ky, kx, c_in) ----
    # NOTE: for bf16 compute the cast happens after the (1-theta) / -theta*w
    # arithmetic; near theta≈1 the center tap can lose a little precision.
    KKC = K * K * C_in
    KKC_pad = ((KKC + 127) // 128) * 128
    C_out_pad = ((C_out + 7) // 8) * 8
    w2d = jnp.transpose(rd_oihw, (0, 2, 3, 1)).reshape(C_out, KKC)
    w2d = jnp.pad(w2d, ((0, C_out_pad - C_out), (0, KKC_pad - KKC)))
    w2d = w2d.astype(compute_dtype)

    # ---- per-kx column-validity masks: 1 where (w + kx - pad) in [0, W) ----
    w_idx = np.arange(HW) % W
    cmask = np.stack(
        [((w_idx + kx - pad >= 0) & (w_idx + kx - pad < W)).astype(np.float32)
         for kx in range(K)])
    cmask = jnp.asarray(cmask).astype(compute_dtype)

    # ---- NCHW input, spatial flattened (free reshape, no transpose) ----
    x_flat = x_nchw.reshape(N, C_in, HW).astype(compute_dtype)

    # Flat padded-image geometry: image placed at a 128-aligned lane offset so
    # the interior store is unmasked; halo covers all vertical out-of-range taps.
    halo = pad * W + pad
    off = ((halo + 127) // 128) * 128
    L = off + HW + halo

    kernel = functools.partial(_rd_conv_kernel, H=H, W=W, C_in=C_in, K=K,
                               pad=pad, off=off)

    out = pl.pallas_call(
        kernel,
        out_shape=jax.ShapeDtypeStruct((N, C_out_pad, HW), x_nchw.dtype),
        grid_spec=pltpu.PrefetchScalarGridSpec(
            num_scalar_prefetch=0,
            grid=(N,),
            in_specs=[
                pl.BlockSpec((1, C_in, HW), lambda n: (n, 0, 0)),
                pl.BlockSpec((C_out_pad, KKC_pad), lambda n: (0, 0)),
                pl.BlockSpec((K, HW), lambda n: (0, 0)),
            ],
            out_specs=pl.BlockSpec((1, C_out_pad, HW), lambda n: (n, 0, 0)),
            scratch_shapes=[
                pltpu.VMEM((C_in, L), compute_dtype),        # flat padded image
                pltpu.VMEM((KKC_pad, HW), compute_dtype),    # im2col patches
            ],
        ),
        compiler_params=pltpu.CompilerParams(
            dimension_semantics=("parallel",),
            vmem_limit_bytes=32 * 1024 * 1024,
        ),
    )(x_flat, w2d, cmask)

    # (N, C_out_pad, H*W) -> (N, C_out, H, W)  (reshape is free; slice only if padded)
    out = out.reshape(N, C_out_pad, H, W)
    if C_out_pad != C_out:
        out = out[:, :C_out]
    return out, rd_oihw


if __name__ == "__main__":
    key = jax.random.PRNGKey(0)
    k_x, k_w = jax.random.split(key)

    N, C_in, C_out, H, W = 2, 4, 8, 16, 16
    theta = 1.0

    x = jax.random.normal(k_x, (N, C_in, H, W), dtype=jnp.float32)
    # deterministic stand-in for nn.Conv2d's kaiming-uniform init
    fan_in = C_in * 3 * 3
    bound = 1.0 / math.sqrt(fan_in)
    weight_3x3 = jax.random.uniform(k_w, (C_out, C_in, 3, 3),
                                    minval=-bound, maxval=bound,
                                    dtype=jnp.float32)

    # f32 path vs. XLA conv reference with the same RD weight (NCHW, pad=2)
    out_f32, rd_weight = rd_conv2d(x, weight_3x3, theta=theta,
                                   compute_dtype=jnp.float32)
    out_f32 = jax.block_until_ready(out_f32)
    ref = jax.lax.conv_general_dilated(
        x, rd_weight, window_strides=(1, 1), padding=((2, 2), (2, 2)),
        dimension_numbers=("NCHW", "OIHW", "NCHW"))
    assert out_f32.shape == (N, C_out, H, W)
    assert jnp.allclose(out_f32, ref, rtol=1e-4, atol=1e-5)

    # bf16-MXU throughput path (f32 accumulation) — looser tolerance
    out_bf16, _ = rd_conv2d(x, weight_3x3, theta=theta,
                            compute_dtype=jnp.bfloat16)
    out_bf16 = jax.block_until_ready(out_bf16)
    assert out_bf16.shape == (N, C_out, H, W)
    assert jnp.allclose(out_bf16, ref, rtol=5e-2, atol=1e-1)

    print("KERNEL_OK")
</pallas_src>

<mosaic_0001>
module attributes {stable_mosaic.version = 11 : i64} {
  func.func @_rd_conv_kernel(%arg0: i32, %arg1: memref<1x4x256xf32, #tpu.memory_space<vmem>>, %arg2: memref<8x128xf32, #tpu.memory_space<vmem>>, %arg3: memref<5x256xf32, #tpu.memory_space<vmem>>, %arg4: memref<1x8x256xf32, #tpu.memory_space<vmem>>, %arg5: memref<4x418xf32, #tpu.memory_space<vmem>>, %arg6: memref<128x256xf32, #tpu.memory_space<vmem>>) attributes {dimension_semantics = [#tpu.dimension_semantics<parallel>], iteration_bounds = array<i64: 2>, scalar_prefetch = 0 : i64, scratch_operands = 2 : i64, tpu.core_type = #tpu.core_type<tc>, window_params = [{transform_indices = @transform_0, window_bounds = array<i64: 1, 4, 256>}, {pipeline_mode = #tpu.pipeline_mode<synchronous>, transform_indices = @transform_1, window_bounds = array<i64: 8, 128>}, {pipeline_mode = #tpu.pipeline_mode<synchronous>, transform_indices = @transform_2, window_bounds = array<i64: 5, 256>}, {transform_indices = @transform_3, window_bounds = array<i64: 1, 8, 256>}]} {
    %cst = arith.constant 0.000000e+00 : f32
    %0 = vector.broadcast %cst : f32 to vector<4x128xf32>
    %c0 = arith.constant 0 : index
    %c0_0 = arith.constant 0 : index
    %1 = vector.load %arg5[%c0, %c0_0] : memref<4x418xf32, #tpu.memory_space<vmem>>, vector<4x128xf32>
    tpu.vector_store %arg5[%c0, %c0_0], %0 {strides = array<i32>} : memref<4x418xf32, #tpu.memory_space<vmem>>, vector<4x128xf32>,
    %cst_1 = arith.constant 0.000000e+00 : f32
    %2 = vector.broadcast %cst_1 : f32 to vector<4x34xf32>
    %c0_2 = arith.constant 0 : index
    %c384 = arith.constant 384 : index
    %3 = vector.load %arg5[%c0_2, %c384] : memref<4x418xf32, #tpu.memory_space<vmem>>, vector<4x34xf32>
    tpu.vector_store %arg5[%c0_2, %c384], %2 {strides = array<i32>} : memref<4x418xf32, #tpu.memory_space<vmem>>, vector<4x34xf32>,
    %c0_3 = arith.constant 0 : index
    %c0_4 = arith.constant 0 : index
    %c0_5 = arith.constant 0 : index
    %4 = vector.load %arg1[%c0_3, %c0_4, %c0_5] : memref<1x4x256xf32, #tpu.memory_space<vmem>>, vector<1x4x256xf32>
    %5 = vector.shape_cast %4 : vector<1x4x256xf32> to vector<4x256xf32>
    %c0_6 = arith.constant 0 : index
    %c128 = arith.constant 128 : index
    %6 = vector.load %arg5[%c0_6, %c128] : memref<4x418xf32, #tpu.memory_space<vmem>>, vector<4x256xf32>
    tpu.vector_store %arg5[%c0_6, %c128], %5 {strides = array<i32>} : memref<4x418xf32, #tpu.memory_space<vmem>>, vector<4x256xf32>,
    %cst_7 = arith.constant 0.000000e+00 : f32
    %7 = vector.broadcast %cst_7 : f32 to vector<28x256xf32>
    %c100 = arith.constant 100 : index
    %c0_8 = arith.constant 0 : index
    %8 = vector.load %arg6[%c100, %c0_8] : memref<128x256xf32, #tpu.memory_space<vmem>>, vector<28x256xf32>
    tpu.vector_store %arg6[%c100, %c0_8], %7 {strides = array<i32>} : memref<128x256xf32, #tpu.memory_space<vmem>>, vector<28x256xf32>,
    %c0_9 = arith.constant 0 : index
    %c0_10 = arith.constant 0 : index
    %9 = vector.load %arg3[%c0_9, %c0_10] : memref<5x256xf32, #tpu.memory_space<vmem>>, vector<1x256xf32>
    %10 = vector.shape_cast %9 : vector<1x256xf32> to vector<1x256xf32>
    %11 = vector.broadcast %10 : vector<1x256xf32> to vector<4x256xf32>
    %c1 = arith.constant 1 : index
    %c0_11 = arith.constant 0 : index
    %12 = vector.load %arg3[%c1, %c0_11] : memref<5x256xf32, #tpu.memory_space<vmem>>, vector<1x256xf32>
    %13 = vector.shape_cast %12 : vector<1x256xf32> to vector<1x256xf32>
    %14 = vector.broadcast %13 : vector<1x256xf32> to vector<4x256xf32>
    %c2 = arith.constant 2 : index
    %c0_12 = arith.constant 0 : index
    %15 = vector.load %arg3[%c2, %c0_12] : memref<5x256xf32, #tpu.memory_space<vmem>>, vector<1x256xf32>
    %16 = vector.shape_cast %15 : vector<1x256xf32> to vector<1x256xf32>
    %17 = vector.broadcast %16 : vector<1x256xf32> to vector<4x256xf32>
    %c3 = arith.constant 3 : index
    %c0_13 = arith.constant 0 : index
    %18 = vector.load %arg3[%c3, %c0_13] : memref<5x256xf32, #tpu.memory_space<vmem>>, vector<1x256xf32>
    %19 = vector.shape_cast %18 : vector<1x256xf32> to vector<1x256xf32>
    %20 = vector.broadcast %19 : vector<1x256xf32> to vector<4x256xf32>
    %c4 = arith.constant 4 : index
    %c0_14 = arith.constant 0 : index
    %21 = vector.load %arg3[%c4, %c0_14] : memref<5x256xf32, #tpu.memory_space<vmem>>, vector<1x256xf32>
    %22 = vector.shape_cast %21 : vector<1x256xf32> to vector<1x256xf32>
    %23 = vector.broadcast %22 : vector<1x256xf32> to vector<4x256xf32>
    %c0_15 = arith.constant 0 : index
    %c94 = arith.constant 94 : index
    %24 = vector.load %arg5[%c0_15, %c94] : memref<4x418xf32, #tpu.memory_space<vmem>>, vector<4x256xf32>
    %25 = arith.mulf %24, %11 : vector<4x256xf32>
    %c0_16 = arith.constant 0 : index
    %c0_17 = arith.constant 0 : index
    %26 = vector.load %arg6[%c0_16, %c0_17] : memref<128x256xf32, #tpu.memory_space<vmem>>, vector<4x256xf32>
    tpu.vector_store %arg6[%c0_16, %c0_17], %25 {strides = array<i32>} : memref<128x256xf32, #tpu.memory_space<vmem>>, vector<4x256xf32>,
    %c0_18 = arith.constant 0 : index
    %c95 = arith.constant 95 : index
    %27 = vector.load %arg5[%c0_18, %c95] : memref<4x418xf32, #tpu.memory_space<vmem>>, vector<4x256xf32>
    %28 = arith.mulf %27, %14 : vector<4x256xf32>
    %c4_19 = arith.constant 4 : index
    %c0_20 = arith.constant 0 : index
    %29 = vector.load %arg6[%c4_19, %c0_20] : memref<128x256xf32, #tpu.memory_space<vmem>>, vector<4x256xf32>
    tpu.vector_store %arg6[%c4_19, %c0_20], %28 {strides = array<i32>} : memref<128x256xf32, #tpu.memory_space<vmem>>, vector<4x256xf32>,
    %c0_21 = arith.constant 0 : index
    %c96 = arith.constant 96 : index
    %30 = vector.load %arg5[%c0_21, %c96] : memref<4x418xf32, #tpu.memory_space<vmem>>, vector<4x256xf32>
    %31 = arith.mulf %30, %17 : vector<4x256xf32>
    %c8 = arith.constant 8 : index
    %c0_22 = arith.constant 0 : index
    %32 = vector.load %arg6[%c8, %c0_22] : memref<128x256xf32, #tpu.memory_space<vmem>>, vector<4x256xf32>
    tpu.vector_store %arg6[%c8, %c0_22], %31 {strides = array<i32>} : memref<128x256xf32, #tpu.memory_space<vmem>>, vector<4x256xf32>,
    %c0_23 = arith.constant 0 : index
    %c97 = arith.constant 97 : index
    %33 = vector.load %arg5[%c0_23, %c97] : memref<4x418xf32, #tpu.memory_space<vmem>>, vector<4x256xf32>
    %34 = arith.mulf %33, %20 : vector<4x256xf32>
    %c12 = arith.constant 12 : index
    %c0_24 = arith.constant 0 : index
    %35 = vector.load %arg6[%c12, %c0_24] : memref<128x256xf32, #tpu.memory_space<vmem>>, vector<4x256xf32>
    tpu.vector_store %arg6[%c12, %c0_24], %34 {strides = array<i32>} : memref<128x256xf32, #tpu.memory_space<vmem>>, vector<4x256xf32>,
    %c0_25 = arith.constant 0 : index
    %c98 = arith.constant 98 : index
    %36 = vector.load %arg5[%c0_25, %c98] : memref<4x418xf32, #tpu.memory_space<vmem>>, vector<4x256xf32>
    %37 = arith.mulf %36, %23 : vector<4x256xf32>
    %c16 = arith.constant 16 : index
    %c0_26 = arith.constant 0 : index
    %38 = vector.load %arg6[%c16, %c0_26] : memref<128x256xf32, #tpu.memory_space<vmem>>, vector<4x256xf32>
    tpu.vector_store %arg6[%c16, %c0_26], %37 {strides = array<i32>} : memref<128x256xf32, #tpu.memory_space<vmem>>, vector<4x256xf32>,
    %c0_27 = arith.constant 0 : index
    %c110 = arith.constant 110 : index
    %39 = vector.load %arg5[%c0_27, %c110] : memref<4x418xf32, #tpu.memory_space<vmem>>, vector<4x256xf32>
    %40 = arith.mulf %39, %11 : vector<4x256xf32>
    %c20 = arith.constant 20 : index
    %c0_28 = arith.constant 0 : index
    %41 = vector.load %arg6[%c20, %c0_28] : memref<128x256xf32, #tpu.memory_space<vmem>>, vector<4x256xf32>
    tpu.vector_store %arg6[%c20, %c0_28], %40 {strides = array<i32>} : memref<128x256xf32, #tpu.memory_space<vmem>>, vector<4x256xf32>,
    %c0_29 = arith.constant 0 : index
    %c111 = arith.constant 111 : index
    %42 = vector.load %arg5[%c0_29, %c111] : memref<4x418xf32, #tpu.memory_space<vmem>>, vector<4x256xf32>
    %43 = arith.mulf %42, %14 : vector<4x256xf32>
    %c24 = arith.constant 24 : index
    %c0_30 = arith.constant 0 : index
    %44 = vector.load %arg6[%c24, %c0_30] : memref<128x256xf32, #tpu.memory_space<vmem>>, vector<4x256xf32>
    tpu.vector_store %arg6[%c24, %c0_30], %43 {strides = array<i32>} : memref<128x256xf32, #tpu.memory_space<vmem>>, vector<4x256xf32>,
    %c0_31 = arith.constant 0 : index
    %c112 = arith.constant 112 : index
    %45 = vector.load %arg5[%c0_31, %c112] : memref<4x418xf32, #tpu.memory_space<vmem>>, vector<4x256xf32>
    %46 = arith.mulf %45, %17 : vector<4x256xf32>
    %c28 = arith.constant 28 : index
    %c0_32 = arith.constant 0 : index
    %47 = vector.load %arg6[%c28, %c0_32] : memref<128x256xf32, #tpu.memory_space<vmem>>, vector<4x256xf32>
    tpu.vector_store %arg6[%c28, %c0_32], %46 {strides = array<i32>} : memref<128x256xf32, #tpu.memory_space<vmem>>, vector<4x256xf32>,
    %c0_33 = arith.constant 0 : index
    %c113 = arith.constant 113 : index
    %48 = vector.load %arg5[%c0_33, %c113] : memref<4x418xf32, #tpu.memory_space<vmem>>, vector<4x256xf32>
    %49 = arith.mulf %48, %20 : vector<4x256xf32>
    %c32 = arith.constant 32 : index
    %c0_34 = arith.constant 0 : index
    %50 = vector.load %arg6[%c32, %c0_34] : memref<128x256xf32, #tpu.memory_space<vmem>>, vector<4x256xf32>
    tpu.vector_store %arg6[%c32, %c0_34], %49 {strides = array<i32>} : memref<128x256xf32, #tpu.memory_space<vmem>>, vector<4x256xf32>,
    %c0_35 = arith.constant 0 : index
    %c114 = arith.constant 114 : index
    %51 = vector.load %arg5[%c0_35, %c114] : memref<4x418xf32, #tpu.memory_space<vmem>>, vector<4x256xf32>
    %52 = arith.mulf %51, %23 : vector<4x256xf32>
    %c36 = arith.constant 36 : index
    %c0_36 = arith.constant 0 : index
    %53 = vector.load %arg6[%c36, %c0_36] : memref<128x256xf32, #tpu.memory_space<vmem>>, vector<4x256xf32>
    tpu.vector_store %arg6[%c36, %c0_36], %52 {strides = array<i32>} : memref<128x256xf32, #tpu.memory_space<vmem>>, vector<4x256xf32>,
    %c0_37 = arith.constant 0 : index
    %c126 = arith.constant 126 : index
    %54 = vector.load %arg5[%c0_37, %c126] : memref<4x418xf32, #tpu.memory_space<vmem>>, vector<4x256xf32>
    %55 = arith.mulf %54, %11 : vector<4x256xf32>
    %c40 = arith.constant 40 : index
    %c0_38 = arith.constant 0 : index
    %56 = vector.load %arg6[%c40, %c0_38] : memref<128x256xf32, #tpu.memory_space<vmem>>, vector<4x256xf32>
    tpu.vector_store %arg6[%c40, %c0_38], %55 {strides = array<i32>} : memref<128x256xf32, #tpu.memory_space<vmem>>, vector<4x256xf32>,
    %c0_39 = arith.constant 0 : index
    %c127 = arith.constant 127 : index
    %57 = vector.load %arg5[%c0_39, %c127] : memref<4x418xf32, #tpu.memory_space<vmem>>, vector<4x256xf32>
    %58 = arith.mulf %57, %14 : vector<4x256xf32>
    %c44 = arith.constant 44 : index
    %c0_40 = arith.constant 0 : index
    %59 = vector.load %arg6[%c44, %c0_40] : memref<128x256xf32, #tpu.memory_space<vmem>>, vector<4x256xf32>
    tpu.vector_store %arg6[%c44, %c0_40], %58 {strides = array<i32>} : memref<128x256xf32, #tpu.memory_space<vmem>>, vector<4x256xf32>,
    %c0_41 = arith.constant 0 : index
    %c128_42 = arith.constant 128 : index
    %60 = vector.load %arg5[%c0_41, %c128_42] : memref<4x418xf32, #tpu.memory_space<vmem>>, vector<4x256xf32>
    %61 = arith.mulf %60, %17 : vector<4x256xf32>
    %c48 = arith.constant 48 : index
    %c0_43 = arith.constant 0 : index
    %62 = vector.load %arg6[%c48, %c0_43] : memref<128x256xf32, #tpu.memory_space<vmem>>, vector<4x256xf32>
    tpu.vector_store %arg6[%c48, %c0_43], %61 {strides = array<i32>} : memref<128x256xf32, #tpu.memory_space<vmem>>, vector<4x256xf32>,
    %c0_44 = arith.constant 0 : index
    %c129 = arith.constant 129 : index
    %63 = vector.load %arg5[%c0_44, %c129] : memref<4x418xf32, #tpu.memory_space<vmem>>, vector<4x256xf32>
    %64 = arith.mulf %63, %20 : vector<4x256xf32>
    %c52 = arith.constant 52 : index
    %c0_45 = arith.constant 0 : index
    %65 = vector.load %arg6[%c52, %c0_45] : memref<128x256xf32, #tpu.memory_space<vmem>>, vector<4x256xf32>
    tpu.vector_store %arg6[%c52, %c0_45], %64 {strides = array<i32>} : memref<128x256xf32, #tpu.memory_space<vmem>>, vector<4x256xf32>,
    %c0_46 = arith.constant 0 : index
    %c130 = arith.constant 130 : index
    %66 = vector.load %arg5[%c0_46, %c130] : memref<4x418xf32, #tpu.memory_space<vmem>>, vector<4x256xf32>
    %67 = arith.mulf %66, %23 : vector<4x256xf32>
    %c56 = arith.constant 56 : index
    %c0_47 = arith.constant 0 : index
    %68 = vector.load %arg6[%c56, %c0_47] : memref<128x256xf32, #tpu.memory_space<vmem>>, vector<4x256xf32>
    tpu.vector_store %arg6[%c56, %c0_47], %67 {strides = array<i32>} : memref<128x256xf32, #tpu.memory_space<vmem>>, vector<4x256xf32>,
    %c0_48 = arith.constant 0 : index
    %c142 = arith.constant 142 : index
    %69 = vector.load %arg5[%c0_48, %c142] : memref<4x418xf32, #tpu.memory_space<vmem>>, vector<4x256xf32>
    %70 = arith.mulf %69, %11 : vector<4x256xf32>
    %c60 = arith.constant 60 : index
    %c0_49 = arith.constant 0 : index
    %71 = vector.load %arg6[%c60, %c0_49] : memref<128x256xf32, #tpu.memory_space<vmem>>, vector<4x256xf32>
    tpu.vector_store %arg6[%c60, %c0_49], %70 {strides = array<i32>} : memref<128x256xf32, #tpu.memory_space<vmem>>, vector<4x256xf32>,
    %c0_50 = arith.constant 0 : index
    %c143 = arith.constant 143 : index
    %72 = vector.load %arg5[%c0_50, %c143] : memref<4x418xf32, #tpu.memory_space<vmem>>, vector<4x256xf32>
    %73 = arith.mulf %72, %14 : vector<4x256xf32>
    %c64 = arith.constant 64 : index
    %c0_51 = arith.constant 0 : index
    %74 = vector.load %arg6[%c64, %c0_51] : memref<128x256xf32, #tpu.memory_space<vmem>>, vector<4x256xf32>
    tpu.vector_store %arg6[%c64, %c0_51], %73 {strides = array<i32>} : memref<128x256xf32, #tpu.memory_space<vmem>>, vector<4x256xf32>,
    %c0_52 = arith.constant 0 : index
    %c144 = arith.constant 144 : index
    %75 = vector.load %arg5[%c0_52, %c144] : memref<4x418xf32, #tpu.memory_space<vmem>>, vector<4x256xf32>
    %76 = arith.mulf %75, %17 : vector<4x256xf32>
    %c68 = arith.constant 68 : index
    %c0_53 = arith.constant 0 : index
    %77 = vector.load %arg6[%c68, %c0_53] : memref<128x256xf32, #tpu.memory_space<vmem>>, vector<4x256xf32>
    tpu.vector_store %arg6[%c68, %c0_53], %76 {strides = array<i32>} : memref<128x256xf32, #tpu.memory_space<vmem>>, vector<4x256xf32>,
    %c0_54 = arith.constant 0 : index
    %c145 = arith.constant 145 : index
    %78 = vector.load %arg5[%c0_54, %c145] : memref<4x418xf32, #tpu.memory_space<vmem>>, vector<4x256xf32>
    %79 = arith.mulf %78, %20 : vector<4x256xf32>
    %c72 = arith.constant 72 : index
    %c0_55 = arith.constant 0 : index
    %80 = vector.load %arg6[%c72, %c0_55] : memref<128x256xf32, #tpu.memory_space<vmem>>, vector<4x256xf32>
    tpu.vector_store %arg6[%c72, %c0_55], %79 {strides = array<i32>} : memref<128x256xf32, #tpu.memory_space<vmem>>, vector<4x256xf32>,
    %c0_56 = arith.constant 0 : index
    %c146 = arith.constant 146 : index
    %81 = vector.load %arg5[%c0_56, %c146] : memref<4x418xf32, #tpu.memory_space<vmem>>, vector<4x256xf32>
    %82 = arith.mulf %81, %23 : vector<4x256xf32>
    %c76 = arith.constant 76 : index
    %c0_57 = arith.constant 0 : index
    %83 = vector.load %arg6[%c76, %c0_57] : memref<128x256xf32, #tpu.memory_space<vmem>>, vector<4x256xf32>
    tpu.vector_store %arg6[%c76, %c0_57], %82 {strides = array<i32>} : memref<128x256xf32, #tpu.memory_space<vmem>>, vector<4x256xf32>,
    %c0_58 = arith.constant 0 : index
    %c158 = arith.constant 158 : index
    %84 = vector.load %arg5[%c0_58, %c158] : memref<4x418xf32, #tpu.memory_space<vmem>>, vector<4x256xf32>
    %85 = arith.mulf %84, %11 : vector<4x256xf32>
    %c80 = arith.constant 80 : index
    %c0_59 = arith.constant 0 : index
    %86 = vector.load %arg6[%c80, %c0_59] : memref<128x256xf32, #tpu.memory_space<vmem>>, vector<4x256xf32>
    tpu.vector_store %arg6[%c80, %c0_59], %85 {strides = array<i32>} : memref<128x256xf32, #tpu.memory_space<vmem>>, vector<4x256xf32>,
    %c0_60 = arith.constant 0 : index
    %c159 = arith.constant 159 : index
    %87 = vector.load %arg5[%c0_60, %c159] : memref<4x418xf32, #tpu.memory_space<vmem>>, vector<4x256xf32>
    %88 = arith.mulf %87, %14 : vector<4x256xf32>
    %c84 = arith.constant 84 : index
    %c0_61 = arith.constant 0 : index
    %89 = vector.load %arg6[%c84, %c0_61] : memref<128x256xf32, #tpu.memory_space<vmem>>, vector<4x256xf32>
    tpu.vector_store %arg6[%c84, %c0_61], %88 {strides = array<i32>} : memref<128x256xf32, #tpu.memory_space<vmem>>, vector<4x256xf32>,
    %c0_62 = arith.constant 0 : index
    %c160 = arith.constant 160 : index
    %90 = vector.load %arg5[%c0_62, %c160] : memref<4x418xf32, #tpu.memory_space<vmem>>, vector<4x256xf32>
    %91 = arith.mulf %90, %17 : vector<4x256xf32>
    %c88 = arith.constant 88 : index
    %c0_63 = arith.constant 0 : index
    %92 = vector.load %arg6[%c88, %c0_63] : memref<128x256xf32, #tpu.memory_space<vmem>>, vector<4x256xf32>
    tpu.vector_store %arg6[%c88, %c0_63], %91 {strides = array<i32>} : memref<128x256xf32, #tpu.memory_space<vmem>>, vector<4x256xf32>,
    %c0_64 = arith.constant 0 : index
    %c161 = arith.constant 161 : index
    %93 = vector.load %arg5[%c0_64, %c161] : memref<4x418xf32, #tpu.memory_space<vmem>>, vector<4x256xf32>
    %94 = arith.mulf %93, %20 : vector<4x256xf32>
    %c92 = arith.constant 92 : index
    %c0_65 = arith.constant 0 : index
    %95 = vector.load %arg6[%c92, %c0_65] : memref<128x256xf32, #tpu.memory_space<vmem>>, vector<4x256xf32>
    tpu.vector_store %arg6[%c92, %c0_65], %94 {strides = array<i32>} : memref<128x256xf32, #tpu.memory_space<vmem>>, vector<4x256xf32>,
    %c0_66 = arith.constant 0 : index
    %c162 = arith.constant 162 : index
    %96 = vector.load %arg5[%c0_66, %c162] : memref<4x418xf32, #tpu.memory_space<vmem>>, vector<4x256xf32>
    %97 = arith.mulf %96, %23 : vector<4x256xf32>
    %c96_67 = arith.constant 96 : index
    %c0_68 = arith.constant 0 : index
    %98 = vector.load %arg6[%c96_67, %c0_68] : memref<128x256xf32, #tpu.memory_space<vmem>>, vector<4x256xf32>
    tpu.vector_store %arg6[%c96_67, %c0_68], %97 {strides = array<i32>} : memref<128x256xf32, #tpu.memory_space<vmem>>, vector<4x256xf32>,
    %c0_69 = arith.constant 0 : index
    %c0_70 = arith.constant 0 : index
    %99 = vector.load %arg2[%c0_69, %c0_70] : memref<8x128xf32, #tpu.memory_space<vmem>>, vector<8x128xf32>
    %c0_71 = arith.constant 0 : index
    %c0_72 = arith.constant 0 : index
    %100 = vector.load %arg6[%c0_71, %c0_72] : memref<128x256xf32, #tpu.memory_space<vmem>>, vector<128x256xf32>
    %cst_73 = arith.constant dense<0.000000e+00> : vector<8x256xf32>
    %101 = tpu.matmul %99, %100, %cst_73 {dimension_numbers = #tpu.dot_dimension_numbers<[1], [0], [0], [1], [0, 0, 1, 1], [], []>} : vector<8x128xf32>, vector<128x256xf32>, vector<8x256xf32> -> vector<8x256xf32>
    %c0_74 = arith.constant 0 : index
    %c0_75 = arith.constant 0 : index
    %c0_76 = arith.constant 0 : index
    %102 = vector.load %arg4[%c0_74, %c0_75, %c0_76] : memref<1x8x256xf32, #tpu.memory_space<vmem>>, vector<1x8x256xf32>
    %103 = vector.shape_cast %102 : vector<1x8x256xf32> to vector<8x256xf32>
    %104 = vector.shape_cast %101 : vector<8x256xf32> to vector<1x8x256xf32>
    tpu.vector_store %arg4[%c0_74, %c0_75, %c0_76], %104 {strides = array<i32>} : memref<1x8x256xf32, #tpu.memory_space<vmem>>, vector<1x8x256xf32>,
    return
  }
  func.func @transform_0(%arg0: i32) -> (i32, i32, i32) {
    %c0_i32 = arith.constant 0 : i32
    %c0_i32_0 = arith.constant 0 : i32
    %c0_i32_1 = arith.constant 0 : i32
    return %arg0, %c0_i32, %c0_i32_0 : i32, i32, i32
  }
  func.func @transform_1(%arg0: i32) -> (i32, i32) {
    %c0_i32 = arith.constant 0 : i32
    %c0_i32_0 = arith.constant 0 : i32
    %c0_i32_1 = arith.constant 0 : i32
    return %c0_i32, %c0_i32_0 : i32, i32
  }
  func.func @transform_2(%arg0: i32) -> (i32, i32) {
    %c0_i32 = arith.constant 0 : i32
    %c0_i32_0 = arith.constant 0 : i32
    %c0_i32_1 = arith.constant 0 : i32
    return %c0_i32, %c0_i32_0 : i32, i32
  }
  func.func @transform_3(%arg0: i32) -> (i32, i32, i32) {
    %c0_i32 = arith.constant 0 : i32
    %c0_i32_0 = arith.constant 0 : i32
    %c0_i32_1 = arith.constant 0 : i32
    return %arg0, %c0_i32, %c0_i32_0 : i32, i32, i32
  }
}

</mosaic_0001>

<llo_original>
// kernel: tpu_custom_call.1
$region0: #{tpu_custom_call.1}
  #allocation0 [shape = 'u32[]', space=smem, size = 0x4, offset = 0x4, fixed_abs, tag = 'smem constant byte address 0x4 - core index']
  #allocation1 [shape = 'u32[72,128]{1,0:T(1,128)}', space=vmem, size = 0x9000, scoped, tag = 'internal scratch']
  #allocation2 [shape = 'f32[4,418]{1,0:T(4,128)}', space=vmem, size = 0x2000, scoped, tag = 'scratch operand']
  #allocation3 [shape = 'f32[128,256]{1,0:T(8,128)}', space=vmem, size = 0x20000, scoped, tag = 'scratch operand']
  %s0 = inlined_call_operand.hbm [shape: f32[2,4,256], index: 0, kind: input, shape index: {}]
  %s1 = inlined_call_operand.hbm [shape: f32[8,128], index: 1, kind: input, shape index: {}]
  %s2 = inlined_call_operand.hbm [shape: f32[5,256], index: 2, kind: input, shape index: {}]
  %s3 = inlined_call_operand.hbm [shape: f32[2,8,256], index: 3, kind: output, shape index: {}]
  %s4 = sld [smem:[#allocation0]]
  $region57: #{tpu_custom_call.1} parent=0
    _
  %s6 = ssub.s32 1, %s4
  %s7 = scalar_select 0, %s6, %s4
  $region1: #{tpu_custom_call.1} parent=0
    #allocation4 [shape = 'u8[8192]{0}', space=vmem, size = 0x2000, scoped, tag = 'input window, operand 0']
    #allocation5 [shape = 's32[2]{0}', space=sflag, size = 0x8, scoped, tag = 'scoped memory for tpu_custom_call.1']
    #allocation6 [shape = 's32[2]{0}', space=sflag, size = 0x8, scoped, tag = 'scoped memory for tpu_custom_call.1']
    #allocation7 [shape = 'u8[4096]{0}', space=vmem, size = 0x1000, scoped, tag = 'input window, operand 1, single buffered']
    #allocation8 [shape = 's32[1]{0}', space=sflag, size = 0x4, scoped, tag = 'scoped memory for tpu_custom_call.1']
    #allocation9 [shape = 'u8[8192]{0}', space=vmem, size = 0x2000, scoped, tag = 'input window, operand 2, single buffered']
    #allocation10 [shape = 'u8[16384]{0}', space=vmem, size = 0x4000, scoped, tag = 'output window, operand 0']
    %8 = vsyncpa [#allocation5], 0
    %s9 = scalar_lea.sflag [#allocation5], 1
    %10 = vsyncpa %s9, 0
    %11 = vsyncpa [#allocation8], 0
    %12 = vsyncpa [#allocation6], 0
    %s13 = scalar_lea.sflag [#allocation6], 1
    %14 = vsyncpa %s13, 0
    loop: start=0, step=1, limit=4
    $region2: #{tpu_custom_call.1} parent=1 // loop_pre_header
      _
    $region3: #{tpu_custom_call.1} parent=1 // loop_header
      %s16 = sphi 0, %s20
      %p17 = scmp.ge.s32.totalorder %s16, 4
      %s26 = sphi 0, %s28
      %s29 = sphi 0, %s26
      %s30 = sphi 0, %s29
      %s46 = sphi 0, %s30
      %s50 = sphi 0, %s50
      %s52 = sphi 0, %s50
      %s53 = sphi 0, %s52
      %s67 = sphi 0, %s53
      %s71 = sphi 0, %s71
      %s73 = sphi 0, %s71
      %s74 = sphi 0, %s73
      %s88 = sphi 0, %s74
      %s94 = sphi 0, %s96
      %s97 = sphi 0, %s94
      %s98 = sphi 0, %s97
      %s114 = sphi 0, %s98
    $region4: #{tpu_custom_call.1} parent=1 // loop_header_branch
      %19 = sbr.rel (%p17) target = $region8
    $region5: #{tpu_custom_call.1} parent=1 // loop_body
      %s21 = ssub.s32 %s16, 1
      %s22 = ssub.s32 %s16, 2
      %s23 = sadd.s32 %s16, 1
      %s24 = ssub.s32 %s16, %s23
      %p25 = scmp.eq.s32.totalorder %s24, 0
      %s27 = sadd.s32 %s26, 1
      %s28 = scalar_select %p25, %s26, %s27
      %p31 = pneg %p25
      %p32 = scmp.eq.s32.totalorder %s16, 1
      %p33 = por %p31, %p32
      %p34 = scmp.ne.s32.totalorder %s26, %s29
      %p35 = scmp.eq.s32.totalorder %s16, 0
      %p36 = por %p34, %p35
      %p37 = scmp.ne.s32.totalorder %s26, %s29
      %p38 = scmp.eq.s32.totalorder %s21, 1
      %p39 = por %p37, %p38
      %p40 = scmp.ne.s32.totalorder %s29, %s30
      %p41 = scmp.eq.s32.totalorder %s21, 0
      %p42 = por %p40, %p41
      %p43 = scmp.ne.s32.totalorder %s29, %s30
      %p44 = scmp.eq.s32.totalorder %s22, 1
      %p45 = por %p43, %p44
      %p47 = scmp.ne.s32.totalorder %s30, %s46
      %p48 = scmp.eq.s32.totalorder %s22, 0
      %p49 = por %p47, %p48
      %s51 = sadd.s32 %s50, 1
      %p54 = scmp.eq.s32.totalorder %s16, 1
      %p55 = scmp.ne.s32.totalorder %s50, %s52
      %p56 = scmp.eq.s32.totalorder %s16, 0
      %p57 = por %p55, %p56
      %p58 = scmp.ne.s32.totalorder %s50, %s52
      %p59 = scmp.eq.s32.totalorder %s21, 1
      %p60 = por %p58, %p59
      %p61 = scmp.ne.s32.totalorder %s52, %s53
      %p62 = scmp.eq.s32.totalorder %s21, 0
      %p63 = por %p61, %p62
      %p64 = scmp.ne.s32.totalorder %s52, %s53
      %p65 = scmp.eq.s32.totalorder %s22, 1
      %p66 = por %p64, %p65
      %p68 = scmp.ne.s32.totalorder %s53, %s67
      %p69 = scmp.eq.s32.totalorder %s22, 0
      %p70 = por %p68, %p69
      %s72 = sadd.s32 %s71, 1
      %p75 = scmp.eq.s32.totalorder %s16, 1
      %p76 = scmp.ne.s32.totalorder %s71, %s73
      %p77 = scmp.eq.s32.totalorder %s16, 0
      %p78 = por %p76, %p77
      %p79 = scmp.ne.s32.totalorder %s71, %s73
      %p80 = scmp.eq.s32.totalorder %s21, 1
      %p81 = por %p79, %p80
      %p82 = scmp.ne.s32.totalorder %s73, %s74
      %p83 = scmp.eq.s32.totalorder %s21, 0
      %p84 = por %p82, %p83
      %p85 = scmp.ne.s32.totalorder %s73, %s74
      %p86 = scmp.eq.s32.totalorder %s22, 1
      %p87 = por %p85, %p86
      %p89 = scmp.ne.s32.totalorder %s74, %s88
      %p90 = scmp.eq.s32.totalorder %s22, 0
      %p91 = por %p89, %p90
      %s92 = ssub.s32 %s16, %s23
      %p93 = scmp.eq.s32.totalorder %s92, 0
      %s95 = sadd.s32 %s94, 1
      %s96 = scalar_select %p93, %s94, %s95
      %p99 = pneg %p93
      %p100 = scmp.eq.s32.totalorder %s16, 1
      %p101 = por %p99, %p100
      %p102 = scmp.ne.s32.totalorder %s94, %s97
      %p103 = scmp.eq.s32.totalorder %s16, 0
      %p104 = por %p102, %p103
      %p105 = scmp.ne.s32.totalorder %s94, %s97
      %p106 = scmp.eq.s32.totalorder %s21, 1
      %p107 = por %p105, %p106
      %p108 = scmp.ne.s32.totalorder %s97, %s98
      %p109 = scmp.eq.s32.totalorder %s21, 0
      %p110 = por %p108, %p109
      %p111 = scmp.ne.s32.totalorder %s97, %s98
      %p112 = scmp.eq.s32.totalorder %s22, 1
      %p113 = por %p111, %p112
      %p115 = scmp.ne.s32.totalorder %s98, %s114
      %p116 = scmp.eq.s32.totalorder %s22, 0
      %p117 = por %p115, %p116
      %p118 = scmp.le.s32.totalorder 1, %s16
      %p119 = scmp.lt.s32.totalorder %s16, 3
      %p120 = pnand %p118, %p119
      %p121 = pneg %p120
      // Predicated region
      $region9: #{tpu_custom_call.1} parent=5 // pred_check
        _
      $region10: #{tpu_custom_call.1} parent=5 // pred_check_branch
        %123 = sbr.rel (%p120) target = $region12
      $region11: #{tpu_custom_call.1} parent=5 // pred_region
        %s124 = ssub.s32 %s16, 1
        // Predicated region
        $region13: #{tpu_custom_call.1} parent=11 // pred_check
          %p125 = pneg %p63
        $region14: #{tpu_custom_call.1} parent=11 // pred_check_branch
          %127 = sbr.rel (%p125) target = $region16
        $region15: #{tpu_custom_call.1} parent=11 // pred_region
          %129 = vsyncadd [#allocation8], 0
          %s131 = sshll.u32 %s1, 4
          %s132 = int_to_ptr.hbm [resolvable:$true] %s131
          %s133 = sshll.u32 [#allocation7], 4
          %s134 = int_to_ptr.vmem [resolvable:$true] %s133
          %136 = dma.hbm_to_vmem [thread:$0]  %s132, 128, %s134, [#allocation8]
        $region16: #{tpu_custom_call.1} parent=11 // pred_fallthru
          _
        // Predicated region
        $region17: #{tpu_custom_call.1} parent=11 // pred_check
          %p137 = pneg %p84
        $region18: #{tpu_custom_call.1} parent=11 // pred_check_branch
          %139 = sbr.rel (%p137) target = $region20
        $region19: #{tpu_custom_call.1} parent=11 // pred_region
          %141 = vsyncadd [#allocation8], 0
          %s143 = sshll.u32 %s2, 4
          %s144 = int_to_ptr.hbm [resolvable:$true] %s143
          %s145 = sshll.u32 [#allocation9], 4
          %s146 = int_to_ptr.vmem [resolvable:$true] %s145
          %148 = dma.hbm_to_vmem [thread:$0]  %s144, 256, %s146, [#allocation8]
        $region20: #{tpu_custom_call.1} parent=11 // pred_fallthru
          _
      $region12: #{tpu_custom_call.1} parent=5 // pred_fallthru
        _
      %p149 = scmp.lt.s32.totalorder %s16, 2
      // Predicated region
      $region21: #{tpu_custom_call.1} parent=5 // pred_check
        %p150 = pneg %p149
      $region22: #{tpu_custom_call.1} parent=5 // pred_check_branch
        %152 = sbr.rel (%p150) target = $region24
      $region23: #{tpu_custom_call.1} parent=5 // pred_region
        // Predicated region
        $region25: #{tpu_custom_call.1} parent=23 // pred_check
          %p153 = pneg %p36
        $region26: #{tpu_custom_call.1} parent=23 // pred_check_branch
          %155 = sbr.rel (%p153) target = $region28
        $region27: #{tpu_custom_call.1} parent=23 // pred_region
          %s156 = sand.u32 %s26, 1
          %s157 = scalar_lea.sflag [#allocation5], %s156
          %s158 = sand.u32 %s26, 1
          %s159 = smul.addr %s158, 8
          %s160 = scalar_lea.vmem [#allocation4], %s159
          %162 = vsyncadd %s157, 0
          %s163 = smul.addr %s16, 2
          %s164 = smul.addr %s163, 4
          %s165 = scalar_lea.hbm %s0, %s164
          %s167 = sshll.u32 %s165, 4
          %s168 = int_to_ptr.hbm [resolvable:$true] %s167
          %s169 = sshll.u32 %s160, 4
          %s170 = int_to_ptr.vmem [resolvable:$true] %s169
          %172 = dma.hbm_to_vmem [thread:$0]  %s168, 128, %s170, %s157
        $region28: #{tpu_custom_call.1} parent=23 // pred_fallthru
          _
      $region24: #{tpu_custom_call.1} parent=5 // pred_fallthru
        _
      %p173 = scmp.le.s32.totalorder 1, %s16
      %p174 = scmp.lt.s32.totalorder %s16, 3
      %p175 = pnand %p173, %p174
      %p176 = pneg %p175
      // Predicated region
      $region29: #{tpu_custom_call.1} parent=5 // pred_check
        _
      $region30: #{tpu_custom_call.1} parent=5 // pred_check_branch
        %178 = sbr.rel (%p175) target = $region32
      $region31: #{tpu_custom_call.1} parent=5 // pred_region
        %s179 = ssub.s32 %s16, 1
        %s180 = sand.u32 %s29, 1
        %s181 = scalar_lea.sflag [#allocation5], %s180
        %s182 = sand.u32 %s29, 1
        %s183 = smul.addr %s182, 8
        %s184 = scalar_lea.vmem [#allocation4], %s183
        // Predicated region
        $region33: #{tpu_custom_call.1} parent=31 // pred_check
          %p185 = pneg %p42
        $region34: #{tpu_custom_call.1} parent=31 // pred_check_branch
          %187 = sbr.rel (%p185) target = $region36
        $region35: #{tpu_custom_call.1} parent=31 // pred_region
          %189 = dma.done %s181, 128
        $region36: #{tpu_custom_call.1} parent=31 // pred_fallthru
          _
        // Predicated region
        $region37: #{tpu_custom_call.1} parent=31 // pred_check
          %p190 = pneg %p63
        $region38: #{tpu_custom_call.1} parent=31 // pred_check_branch
          %192 = sbr.rel (%p190) target = $region40
        $region39: #{tpu_custom_call.1} parent=31 // pred_region
          %194 = dma.done [#allocation8], 128
        $region40: #{tpu_custom_call.1} parent=31 // pred_fallthru
          _
        // Predicated region
        $region41: #{tpu_custom_call.1} parent=31 // pred_check
          %p195 = pneg %p84
        $region42: #{tpu_custom_call.1} parent=31 // pred_check_branch
          %197 = sbr.rel (%p195) target = $region44
        $region43: #{tpu_custom_call.1} parent=31 // pred_region
          %199 = dma.done [#allocation8], 256
        $region44: #{tpu_custom_call.1} parent=31 // pred_fallthru
          _
        %s200 = sand.u32 %s29, 1
        %s201 = scalar_lea.sflag [#allocation5], %s200
        %s202 = sand.u32 %s29, 1
        %s203 = smul.addr %s202, 8
        %s204 = scalar_lea.vmem [#allocation4], %s203
        %p205 = pneg %p42
        %p206 = pneg %p39
        %p207 = pneg %p63
        %p208 = pneg %p60
        %p209 = pneg %p84
        %p210 = pneg %p81
        %p211 = pneg %p110
        %p212 = pneg %p107
        %s213 = sand.u32 %s97, 1
        %s214 = scalar_lea.sflag [#allocation6], %s213
        %s215 = sand.u32 %s97, 1
        %s216 = smul.addr %s215, 16
        %s217 = scalar_lea.vmem [#allocation10], %s216
        %218 = vst [vmem:[#allocation2] sm:$0xf] 0.0
        %vm219 = vcmask 273408
        %220 = vst.msk [vmem:[#allocation2 + $0xc] sm:$0xf] %vm219, 0.0
        %v221 = vld [vmem:[%s184] sm:$0xff]
        %222 = vst [vmem:[#allocation2 + $0x4] sm:$0xff] %v221
        %223 = vst [vmem:[#allocation3 + $0xc0] sm:$0xf0] 0.0
        %224 = vst [vmem:[#allocation3 + $0xc8] sm:$0xf0] 0.0
        %225 = vst [vmem:[#allocation3 + $0xd0] sm:$0xff] 0.0
        %226 = vst [vmem:[#allocation3 + $0xd8] sm:$0xff] 0.0
        %227 = vst [vmem:[#allocation3 + $0xe0] sm:$0xff] 0.0
        %228 = vst [vmem:[#allocation3 + $0xe8] sm:$0xff] 0.0
        %229 = vst [vmem:[#allocation3 + $0xf0] sm:$0xff] 0.0
        %230 = vst [vmem:[#allocation3 + $0xf8] sm:$0xff] 0.0
        %v231 = vld [vmem:[#allocation9] ss:$8 sm:$0x3]
        %v233 = vperm.slane %v231, 0
        %v234 = vperm.slane %v231, 1
        %s235 = scalar_lea.vmem [#allocation9], 1
        %v236 = vld [vmem:[%s235] ss:$8 sm:$0x3]
        %v238 = vperm.slane %v236, 0
        %v239 = vperm.slane %v236, 1
        %s240 = scalar_lea.vmem [#allocation9], 2
        %v241 = vld [vmem:[%s240] ss:$8 sm:$0x3]
        %v243 = vperm.slane %v241, 0
        %v244 = vperm.slane %v241, 1
        %s245 = scalar_lea.vmem [#allocation9], 3
        %v246 = vld [vmem:[%s245] ss:$8 sm:$0x3]
        %v248 = vperm.slane %v246, 0
        %v249 = vperm.slane %v246, 1
        %s250 = scalar_lea.vmem [#allocation9], 4
        %v251 = vld [vmem:[%s250] ss:$8 sm:$0x3]
        %v253 = vperm.slane %v251, 0
        %v254 = vperm.slane %v251, 1
        %v255 = vld [vmem:[#allocation2] sm:$0xff]
        %v256 = vld [vmem:[#allocation2 + $0x8] sm:$0xf]
        %v257 = vrot.slane %v234, 4
        %vm258 = vcmask 1043456
        %v259 = vsel %vm258, %v233, %v257
        %260 = vrot.lane.b32.xlu0 %v259, 94
        %v261 = vpop.permute.xlu0 %260
        %v262 = vrot.slane %v261, 4
        %vm263 = vcmask 769024
        %v264 = vsel %vm263, %v262, %v261
        %v267 = vmul.f32 %v255, %v264
        %v268 = vmul.f32 %v256, %v262
        %271 = vst [vmem:[#allocation1] ss:$2 sm:$0xff] %v267
        %s272 = scalar_lea.vmem [#allocation1], 16
        %273 = vst [vmem:[%s272] ss:$2 sm:$0xff] %v268
        %v274 = vld.sshfl [vmem:[#allocation1] sm:$0xff pattern:$0x75316420]
        %v275 = vld.sshfl [vmem:[#allocation1 + $0x8] sm:$0xff pattern:$0x75316420]
        %v276 = vld.sshfl [vmem:[#allocation1 + $0x10] sm:$0xff pattern:$0x75316420]
        %277 = vrot.lane.b32.xlu0 %v274, 34
        %v278 = vpop.permute.xlu0 %277
        %279 = vrot.lane.b32.xlu0 %v275, 34
        %v280 = vpop.permute.xlu0 %279
        %281 = vrot.lane.b32.xlu0 %v276, 34
        %v282 = vpop.permute.xlu0 %281
        %vm283 = vcmask 277504
        %v284 = vsel %vm283, %v278, %v280
        %v285 = vsel %vm283, %v280, %v282
        %288 = vst [vmem:[#allocation3] sm:$0xf] %v284
        %289 = vst [vmem:[#allocation3 + $0x8] sm:$0xf] %v285
        %v290 = vld [vmem:[#allocation2] sm:$0xff]
        %v291 = vld [vmem:[#allocation2 + $0x8] sm:$0xf]
        %v292 = vrot.slane %v239, 4
        %v293 = vsel %vm258, %v238, %v292
        %294 = vrot.lane.b32.xlu0 %v293, 95
        %v295 = vpop.permute.xlu0 %294
        %v296 = vrot.slane %v295, 4
        %vm297 = vcmask 777216
        %v298 = vsel %vm297, %v296, %v295
        %v301 = vmul.f32 %v290, %v298
        %v302 = vmul.f32 %v291, %v296
        %s305 = scalar_lea.vmem [#allocation1], 1
        %306 = vst [vmem:[%s305] ss:$2 sm:$0xff] %v301
        %s307 = scalar_lea.vmem [#allocation1], 17
        %308 = vst [vmem:[%s307] ss:$2 sm:$0xff] %v302
        %v309 = vld.sshfl [vmem:[#allocation1] sm:$0xff pattern:$0x75316420]
        %v310 = vld.sshfl [vmem:[#allocation1 + $0x8] sm:$0xff pattern:$0x75316420]
        %v311 = vld.sshfl [vmem:[#allocation1 + $0x10] sm:$0xff pattern:$0x75316420]
        %312 = vrot.lane.b32.xlu0 %v309, 33
        %v313 = vpop.permute.xlu0 %312
        %314 = vrot.lane.b32.xlu0 %v310, 33
        %v315 = vpop.permute.xlu0 %314
        %316 = vrot.lane.b32.xlu0 %v311, 33
        %v317 = vpop.permute.xlu0 %316
        %vm318 = vcmask 269312
        %v319 = vsel %vm318, %v313, %v315
        %v320 = vsel %vm318, %v315, %v317
        %323 = vst [vmem:[#allocation3] sm:$0xf0] %v319
        %324 = vst [vmem:[#allocation3 + $0x8] sm:$0xf0] %v320
        %v325 = vld [vmem:[#allocation2] sm:$0xff]
        %v326 = vld [vmem:[#allocation2 + $0x8] sm:$0xf]
        %v327 = vrot.slane %v244, 4
        %v328 = vsel %vm258, %v243, %v327
        %329 = vrot.lane.b32.xlu0 %v328, 96
        %v330 = vpop.permute.xlu0 %329
        %v331 = vrot.slane %v330, 4
        %vm332 = vcmask 785408
        %v333 = vsel %vm332, %v331, %v330
        %v336 = vmul.f32 %v325, %v333
        %v337 = vmul.f32 %v326, %v331
        %340 = vst [vmem:[#allocation1] ss:$2 sm:$0xff] %v336
        %s341 = scalar_lea.vmem [#allocation1], 16
        %342 = vst [vmem:[%s341] ss:$2 sm:$0xff] %v337
        %v343 = vld.sshfl [vmem:[#allocation1] sm:$0xff pattern:$0x75316420]
        %v344 = vld.sshfl [vmem:[#allocation1 + $0x8] sm:$0xff pattern:$0x75316420]
        %v345 = vld.sshfl [vmem:[#allocation1 + $0x10] sm:$0xff pattern:$0x75316420]
        %346 = vrot.lane.b32.xlu0 %v343, 32
        %v347 = vpop.permute.xlu0 %346
        %348 = vrot.lane.b32.xlu0 %v344, 32
        %v349 = vpop.permute.xlu0 %348
        %350 = vrot.lane.b32.xlu0 %v345, 32
        %v351 = vpop.permute.xlu0 %350
        %vm352 = vcmask 261120
        %v353 = vsel %vm352, %v347, %v349
        %v354 = vsel %vm352, %v349, %v351
        %357 = vst [vmem:[#allocation3 + $0x10] sm:$0xf] %v353
        %358 = vst [vmem:[#allocation3 + $0x18] sm:$0xf] %v354
        %v359 = vld [vmem:[#allocation2] sm:$0xff]
        %v360 = vld [vmem:[#allocation2 + $0x8] sm:$0xf]
        %v361 = vrot.slane %v249, 4
        %v362 = vsel %vm258, %v248, %v361
        %363 = vrot.lane.b32.xlu0 %v362, 97
        %v364 = vpop.permute.xlu0 %363
        %v365 = vrot.slane %v364, 4
        %vm366 = vcmask 793600
        %v367 = vsel %vm366, %v365, %v364
        %v370 = vmul.f32 %v359, %v367
        %v371 = vmul.f32 %v360, %v365
        %s374 = scalar_lea.vmem [#allocation1], 1
        %375 = vst [vmem:[%s374] ss:$2 sm:$0xff] %v370
        %s376 = scalar_lea.vmem [#allocation1], 17
        %377 = vst [vmem:[%s376] ss:$2 sm:$0xff] %v371
        %v378 = vld.sshfl [vmem:[#allocation1] sm:$0xff pattern:$0x75316420]
        %v379 = vld.sshfl [vmem:[#allocation1 + $0x8] sm:$0xff pattern:$0x75316420]
        %v380 = vld.sshfl [vmem:[#allocation1 + $0x10] sm:$0xff pattern:$0x75316420]
        %381 = vrot.lane.b32.xlu0 %v378, 31
        %v382 = vpop.permute.xlu0 %381
        %383 = vrot.lane.b32.xlu0 %v379, 31
        %v384 = vpop.permute.xlu0 %383
        %385 = vrot.lane.b32.xlu0 %v380, 31
        %v386 = vpop.permute.xlu0 %385
        %vm387 = vcmask 252928
        %v388 = vsel %vm387, %v382, %v384
        %v389 = vsel %vm387, %v384, %v386
        %392 = vst [vmem:[#allocation3 + $0x10] sm:$0xf0] %v388
        %393 = vst [vmem:[#allocation3 + $0x18] sm:$0xf0] %v389
        %v394 = vld [vmem:[#allocation2] sm:$0xff]
        %v395 = vld [vmem:[#allocation2 + $0x8] sm:$0xf]
        %v396 = vrot.slane %v254, 4
        %v397 = vsel %vm258, %v253, %v396
        %398 = vrot.lane.b32.xlu0 %v397, 98
        %v399 = vpop.permute.xlu0 %398
        %v400 = vrot.slane %v399, 4
        %vm401 = vcmask 801792
        %v402 = vsel %vm401, %v400, %v399
        %v405 = vmul.f32 %v394, %v402
        %v406 = vmul.f32 %v395, %v400
        %409 = vst [vmem:[#allocation1] ss:$2 sm:$0xff] %v405
        %s410 = scalar_lea.vmem [#allocation1], 16
        %411 = vst [vmem:[%s410] ss:$2 sm:$0xff] %v406
        %v412 = vld.sshfl [vmem:[#allocation1] sm:$0xff pattern:$0x75316420]
        %v413 = vld.sshfl [vmem:[#allocation1 + $0x8] sm:$0xff pattern:$0x75316420]
        %v414 = vld.sshfl [vmem:[#allocation1 + $0x10] sm:$0xff pattern:$0x75316420]
        %415 = vrot.lane.b32.xlu0 %v412, 30
        %v416 = vpop.permute.xlu0 %415
        %417 = vrot.lane.b32.xlu0 %v413, 30
        %v418 = vpop.permute.xlu0 %417
        %419 = vrot.lane.b32.xlu0 %v414, 30
        %v420 = vpop.permute.xlu0 %419
        %vm421 = vcmask 244736
        %v422 = vsel %vm421, %v416, %v418
        %v423 = vsel %vm421, %v418, %v420
        %426 = vst [vmem:[#allocation3 + $0x20] sm:$0xf] %v422
        %427 = vst [vmem:[#allocation3 + $0x28] sm:$0xf] %v423
        %v428 = vld [vmem:[#allocation2] sm:$0xff]
        %v429 = vld [vmem:[#allocation2 + $0x8] sm:$0xf]
        %430 = vrot.lane.b32.xlu0 %v259, 110
        %v431 = vpop.permute.xlu0 %430
        %v432 = vrot.slane %v431, 4
        %vm433 = vcmask 900096
        %v434 = vsel %vm433, %v432, %v431
        %v437 = vmul.f32 %v428, %v434
        %v438 = vmul.f32 %v429, %v432
        %s441 = scalar_lea.vmem [#allocation1], 1
        %442 = vst [vmem:[%s441] ss:$2 sm:$0xff] %v437
        %s443 = scalar_lea.vmem [#allocation1], 17
        %444 = vst [vmem:[%s443] ss:$2 sm:$0xff] %v438
        %v445 = vld.sshfl [vmem:[#allocation1] sm:$0xff pattern:$0x75316420]
        %v446 = vld.sshfl [vmem:[#allocation1 + $0x8] sm:$0xff pattern:$0x75316420]
        %v447 = vld.sshfl [vmem:[#allocation1 + $0x10] sm:$0xff pattern:$0x75316420]
        %448 = vrot.lane.b32.xlu0 %v445, 18
        %v449 = vpop.permute.xlu0 %448
        %450 = vrot.lane.b32.xlu0 %v446, 18
        %v451 = vpop.permute.xlu0 %450
        %452 = vrot.lane.b32.xlu0 %v447, 18
        %v453 = vpop.permute.xlu0 %452
        %vm454 = vcmask 146432
        %v455 = vsel %vm454, %v449, %v451
        %v456 = vsel %vm454, %v451, %v453
        %459 = vst [vmem:[#allocation3 + $0x20] sm:$0xf0] %v455
        %460 = vst [vmem:[#allocation3 + $0x28] sm:$0xf0] %v456
        %v461 = vld [vmem:[#allocation2] sm:$0xff]
        %v462 = vld [vmem:[#allocation2 + $0x8] sm:$0xf]
        %463 = vrot.lane.b32.xlu0 %v293, 111
        %v464 = vpop.permute.xlu0 %463
        %v465 = vrot.slane %v464, 4
        %vm466 = vcmask 908288
        %v467 = vsel %vm466, %v465, %v464
        %v470 = vmul.f32 %v461, %v467
        %v471 = vmul.f32 %v462, %v465
        %474 = vst [vmem:[#allocation1] ss:$2 sm:$0xff] %v470
        %s475 = scalar_lea.vmem [#allocation1], 16
        %476 = vst [vmem:[%s475] ss:$2 sm:$0xff] %v471
        %v477 = vld.sshfl [vmem:[#allocation1] sm:$0xff pattern:$0x75316420]
        %v478 = vld.sshfl [vmem:[#allocation1 + $0x8] sm:$0xff pattern:$0x75316420]
        %v479 = vld.sshfl [vmem:[#allocation1 + $0x10] sm:$0xff pattern:$0x75316420]
        %480 = vrot.lane.b32.xlu0 %v477, 17
        %v481 = vpop.permute.xlu0 %480
        %482 = vrot.lane.b32.xlu0 %v478, 17
        %v483 = vpop.permute.xlu0 %482
        %484 = vrot.lane.b32.xlu0 %v479, 17
        %v485 = vpop.permute.xlu0 %484
        %vm486 = vcmask 138240
        %v487 = vsel %vm486, %v481, %v483
        %v488 = vsel %vm486, %v483, %v485
        %491 = vst [vmem:[#allocation3 + $0x30] sm:$0xf] %v487
        %492 = vst [vmem:[#allocation3 + $0x38] sm:$0xf] %v488
        %v493 = vld [vmem:[#allocation2] sm:$0xff]
        %v494 = vld [vmem:[#allocation2 + $0x8] sm:$0xf]
        %495 = vrot.lane.b32.xlu0 %v328, 112
        %v496 = vpop.permute.xlu0 %495
        %v497 = vrot.slane %v496, 4
        %vm498 = vcmask 916480
        %v499 = vsel %vm498, %v497, %v496
        %v502 = vmul.f32 %v493, %v499
        %v503 = vmul.f32 %v494, %v497
        %s506 = scalar_lea.vmem [#allocation1], 1
        %507 = vst [vmem:[%s506] ss:$2 sm:$0xff] %v502
        %s508 = scalar_lea.vmem [#allocation1], 17
        %509 = vst [vmem:[%s508] ss:$2 sm:$0xff] %v503
        %v510 = vld.sshfl [vmem:[#allocation1] sm:$0xff pattern:$0x75316420]
        %v511 = vld.sshfl [vmem:[#allocation1 + $0x8] sm:$0xff pattern:$0x75316420]
        %v512 = vld.sshfl [vmem:[#allocation1 + $0x10] sm:$0xff pattern:$0x75316420]
        %513 = vrot.lane.b32.xlu0 %v510, 16
        %v514 = vpop.permute.xlu0 %513
        %515 = vrot.lane.b32.xlu0 %v511, 16
        %v516 = vpop.permute.xlu0 %515
        %517 = vrot.lane.b32.xlu0 %v512, 16
        %v518 = vpop.permute.xlu0 %517
        %vm519 = vcmask 130048
        %v520 = vsel %vm519, %v514, %v516
        %v521 = vsel %vm519, %v516, %v518
        %524 = vst [vmem:[#allocation3 + $0x30] sm:$0xf0] %v520
        %525 = vst [vmem:[#allocation3 + $0x38] sm:$0xf0] %v521
        %v526 = vld [vmem:[#allocation2] sm:$0xff]
        %v527 = vld [vmem:[#allocation2 + $0x8] sm:$0xf]
        %528 = vrot.lane.b32.xlu0 %v362, 113
        %v529 = vpop.permute.xlu0 %528
        %v530 = vrot.slane %v529, 4
        %vm531 = vcmask 924672
        %v532 = vsel %vm531, %v530, %v529
        %v535 = vmul.f32 %v526, %v532
        %v536 = vmul.f32 %v527, %v530
        %539 = vst [vmem:[#allocation1] ss:$2 sm:$0xff] %v535
        %s540 = scalar_lea.vmem [#allocation1], 16
        %541 = vst [vmem:[%s540] ss:$2 sm:$0xff] %v536
        %v542 = vld.sshfl [vmem:[#allocation1] sm:$0xff pattern:$0x75316420]
        %v543 = vld.sshfl [vmem:[#allocation1 + $0x8] sm:$0xff pattern:$0x75316420]
        %v544 = vld.sshfl [vmem:[#allocation1 + $0x10] sm:$0xff pattern:$0x75316420]
        %545 = vrot.lane.b32.xlu0 %v542, 15
        %v546 = vpop.permute.xlu0 %545
        %547 = vrot.lane.b32.xlu0 %v543, 15
        %v548 = vpop.permute.xlu0 %547
        %549 = vrot.lane.b32.xlu0 %v544, 15
        %v550 = vpop.permute.xlu0 %549
        %vm551 = vcmask 121856
        %v552 = vsel %vm551, %v546, %v548
        %v553 = vsel %vm551, %v548, %v550
        %556 = vst [vmem:[#allocation3 + $0x40] sm:$0xf] %v552
        %557 = vst [vmem:[#allocation3 + $0x48] sm:$0xf] %v553
        %v558 = vld [vmem:[#allocation2] sm:$0xff]
        %v559 = vld [vmem:[#allocation2 + $0x8] sm:$0xf]
        %560 = vrot.lane.b32.xlu0 %v397, 114
        %v561 = vpop.permute.xlu0 %560
        %v562 = vrot.slane %v561, 4
        %vm563 = vcmask 932864
        %v564 = vsel %vm563, %v562, %v561
        %v567 = vmul.f32 %v558, %v564
        %v568 = vmul.f32 %v559, %v562
        %s571 = scalar_lea.vmem [#allocation1], 1
        %572 = vst [vmem:[%s571] ss:$2 sm:$0xff] %v567
        %s573 = scalar_lea.vmem [#allocation1], 17
        %574 = vst [vmem:[%s573] ss:$2 sm:$0xff] %v568
        %v575 = vld.sshfl [vmem:[#allocation1] sm:$0xff pattern:$0x75316420]
        %v576 = vld.sshfl [vmem:[#allocation1 + $0x8] sm:$0xff pattern:$0x75316420]
        %v577 = vld.sshfl [vmem:[#allocation1 + $0x10] sm:$0xff pattern:$0x75316420]
        %578 = vrot.lane.b32.xlu0 %v575, 14
        %v579 = vpop.permute.xlu0 %578
        %580 = vrot.lane.b32.xlu0 %v576, 14
        %v581 = vpop.permute.xlu0 %580
        %582 = vrot.lane.b32.xlu0 %v577, 14
        %v583 = vpop.permute.xlu0 %582
        %vm584 = vcmask 113664
        %v585 = vsel %vm584, %v579, %v581
        %v586 = vsel %vm584, %v581, %v583
        %589 = vst [vmem:[#allocation3 + $0x40] sm:$0xf0] %v585
        %590 = vst [vmem:[#allocation3 + $0x48] sm:$0xf0] %v586
        %v591 = vld [vmem:[#allocation2] sm:$0xff]
        %v592 = vld [vmem:[#allocation2 + $0x8] sm:$0xf]
        %593 = vrot.lane.b32.xlu0 %v259, 126
        %v594 = vpop.permute.xlu0 %593
        %v595 = vrot.slane %v594, 4
        %vm596 = vcmask 1031168
        %v597 = vsel %vm596, %v595, %v594
        %v600 = vmul.f32 %v591, %v597
        %v601 = vmul.f32 %v592, %v595
        %604 = vst [vmem:[#allocation1] ss:$2 sm:$0xff] %v600
        %s605 = scalar_lea.vmem [#allocation1], 16
        %606 = vst [vmem:[%s605] ss:$2 sm:$0xff] %v601
        %v607 = vld.sshfl [vmem:[#allocation1] sm:$0xff pattern:$0x75316420]
        %v608 = vld.sshfl [vmem:[#allocation1 + $0x8] sm:$0xff pattern:$0x75316420]
        %v609 = vld.sshfl [vmem:[#allocation1 + $0x10] sm:$0xff pattern:$0x75316420]
        %610 = vrot.lane.b32.xlu0 %v607, 2
        %v611 = vpop.permute.xlu0 %610
        %612 = vrot.lane.b32.xlu0 %v608, 2
        %v613 = vpop.permute.xlu0 %612
        %614 = vrot.lane.b32.xlu0 %v609, 2
        %v615 = vpop.permute.xlu0 %614
        %vm616 = vcmask 15360
        %v617 = vsel %vm616, %v611, %v613
        %v618 = vsel %vm616, %v613, %v615
        %621 = vst [vmem:[#allocation3 + $0x50] sm:$0xf] %v617
        %622 = vst [vmem:[#allocation3 + $0x58] sm:$0xf] %v618
        %v623 = vld [vmem:[#allocation2] sm:$0xff]
        %v624 = vld [vmem:[#allocation2 + $0x8] sm:$0xf]
        %625 = vrot.lane.b32.xlu0 %v293, 127
        %v626 = vpop.permute.xlu0 %625
        %v627 = vrot.slane %v626, 4
        %vm628 = vcmask 1039360
        %v629 = vsel %vm628, %v627, %v626
        %v632 = vmul.f32 %v623, %v629
        %v633 = vmul.f32 %v624, %v627
        %s636 = scalar_lea.vmem [#allocation1], 1
        %637 = vst [vmem:[%s636] ss:$2 sm:$0xff] %v632
        %s638 = scalar_lea.vmem [#allocation1], 17
        %639 = vst [vmem:[%s638] ss:$2 sm:$0xff] %v633
        %v640 = vld.sshfl [vmem:[#allocation1] sm:$0xff pattern:$0x75316420]
        %v641 = vld.sshfl [vmem:[#allocation1 + $0x8] sm:$0xff pattern:$0x75316420]
        %v642 = vld.sshfl [vmem:[#allocation1 + $0x10] sm:$0xff pattern:$0x75316420]
        %643 = vrot.lane.b32.xlu0 %v640, 1
        %v644 = vpop.permute.xlu0 %643
        %645 = vrot.lane.b32.xlu0 %v641, 1
        %v646 = vpop.permute.xlu0 %645
        %647 = vrot.lane.b32.xlu0 %v642, 1
        %v648 = vpop.permute.xlu0 %647
        %vm649 = vcmask 7168
        %v650 = vsel %vm649, %v644, %v646
        %v651 = vsel %vm649, %v646, %v648
        %654 = vst [vmem:[#allocation3 + $0x50] sm:$0xf0] %v650
        %655 = vst [vmem:[#allocation3 + $0x58] sm:$0xf0] %v651
        %v656 = vld [vmem:[#allocation2 + $0x4] sm:$0xff]
        %v658 = vmul.f32 %v656, %v328
        %660 = vst [vmem:[#allocation1] ss:$2 sm:$0xff] %v658
        %v661 = vld.sshfl [vmem:[#allocation1] sm:$0xff pattern:$0x75316420]
        %v662 = vld.sshfl [vmem:[#allocation1 + $0x8] sm:$0xff pattern:$0x75316420]
        %665 = vst [vmem:[#allocation3 + $0x60] sm:$0xf] %v661
        %666 = vst [vmem:[#allocation3 + $0x68] sm:$0xf] %v662
        %v667 = vld [vmem:[#allocation2 + $0x4] sm:$0xff]
        %v668 = vld [vmem:[#allocation2 + $0xc] sm:$0xf]
        %669 = vrot.lane.b32.xlu0 %v362, 1
        %v670 = vpop.permute.xlu0 %669
        %v671 = vrot.slane %v670, 4
        %v672 = vsel %vm649, %v671, %v670
        %v675 = vmul.f32 %v667, %v672
        %v676 = vmul.f32 %v668, %v671
        %s679 = scalar_lea.vmem [#allocation1], 1
        %680 = vst [vmem:[%s679] ss:$2 sm:$0xff] %v675
        %s681 = scalar_lea.vmem [#allocation1], 17
        %682 = vst [vmem:[%s681] ss:$2 sm:$0xff] %v676
        %v683 = vld.sshfl [vmem:[#allocation1] sm:$0xff pattern:$0x75316420]
        %v684 = vld.sshfl [vmem:[#allocation1 + $0x8] sm:$0xff pattern:$0x75316420]
        %v685 = vld.sshfl [vmem:[#allocation1 + $0x10] sm:$0xff pattern:$0x75316420]
        %686 = vrot.lane.b32.xlu0 %v683, 127
        %v687 = vpop.permute.xlu0 %686
        %688 = vrot.lane.b32.xlu0 %v684, 127
        %v689 = vpop.permute.xlu0 %688
        %690 = vrot.lane.b32.xlu0 %v685, 127
        %v691 = vpop.permute.xlu0 %690
        %v692 = vsel %vm628, %v687, %v689
        %v693 = vsel %vm628, %v689, %v691
        %696 = vst [vmem:[#allocation3 + $0x60] sm:$0xf0] %v692
        %697 = vst [vmem:[#allocation3 + $0x68] sm:$0xf0] %v693
        %v698 = vld [vmem:[#allocation2 + $0x4] sm:$0xff]
        %v699 = vld [vmem:[#allocation2 + $0xc] sm:$0xf]
        %700 = vrot.lane.b32.xlu0 %v397, 2
        %v701 = vpop.permute.xlu0 %700
        %v702 = vrot.slane %v701, 4
        %v703 = vsel %vm616, %v702, %v701
        %v706 = vmul.f32 %v698, %v703
        %v707 = vmul.f32 %v699, %v702
        %710 = vst [vmem:[#allocation1] ss:$2 sm:$0xff] %v706
        %s711 = scalar_lea.vmem [#allocation1], 16
        %712 = vst [vmem:[%s711] ss:$2 sm:$0xff] %v707
        %v713 = vld.sshfl [vmem:[#allocation1] sm:$0xff pattern:$0x75316420]
        %v714 = vld.sshfl [vmem:[#allocation1 + $0x8] sm:$0xff pattern:$0x75316420]
        %v715 = vld.sshfl [vmem:[#allocation1 + $0x10] sm:$0xff pattern:$0x75316420]
        %716 = vrot.lane.b32.xlu0 %v713, 126
        %v717 = vpop.permute.xlu0 %716
        %718 = vrot.lane.b32.xlu0 %v714, 126
        %v719 = vpop.permute.xlu0 %718
        %720 = vrot.lane.b32.xlu0 %v715, 126
        %v721 = vpop.permute.xlu0 %720
        %v722 = vsel %vm596, %v717, %v719
        %v723 = vsel %vm596, %v719, %v721
        %726 = vst [vmem:[#allocation3 + $0x70] sm:$0xf] %v722
        %727 = vst [vmem:[#allocation3 + $0x78] sm:$0xf] %v723
        %v728 = vld [vmem:[#allocation2 + $0x4] sm:$0xff]
        %v729 = vld [vmem:[#allocation2 + $0xc] sm:$0xf]
        %730 = vrot.lane.b32.xlu0 %v259, 14
        %v731 = vpop.permute.xlu0 %730
        %v732 = vrot.slane %v731, 4
        %v733 = vsel %vm584, %v732, %v731
        %v736 = vmul.f32 %v728, %v733
        %v737 = vmul.f32 %v729, %v732
        %s740 = scalar_lea.vmem [#allocation1], 1
        %741 = vst [vmem:[%s740] ss:$2 sm:$0xff] %v736
        %s742 = scalar_lea.vmem [#allocation1], 17
        %743 = vst [vmem:[%s742] ss:$2 sm:$0xff] %v737
        %v744 = vld.sshfl [vmem:[#allocation1] sm:$0xff pattern:$0x75316420]
        %v745 = vld.sshfl [vmem:[#allocation1 + $0x8] sm:$0xff pattern:$0x75316420]
        %v746 = vld.sshfl [vmem:[#allocation1 + $0x10] sm:$0xff pattern:$0x75316420]
        %747 = vrot.lane.b32.xlu0 %v744, 114
        %v748 = vpop.permute.xlu0 %747
        %749 = vrot.lane.b32.xlu0 %v745, 114
        %v750 = vpop.permute.xlu0 %749
        %751 = vrot.lane.b32.xlu0 %v746, 114
        %v752 = vpop.permute.xlu0 %751
        %v753 = vsel %vm563, %v748, %v750
        %v754 = vsel %vm563, %v750, %v752
        %757 = vst [vmem:[#allocation3 + $0x70] sm:$0xf0] %v753
        %758 = vst [vmem:[#allocation3 + $0x78] sm:$0xf0] %v754
        %v759 = vld [vmem:[#allocation2 + $0x4] sm:$0xff]
        %v760 = vld [vmem:[#allocation2 + $0xc] sm:$0xf]
        %761 = vrot.lane.b32.xlu0 %v293, 15
        %v762 = vpop.permute.xlu0 %761
        %v763 = vrot.slane %v762, 4
        %v764 = vsel %vm551, %v763, %v762
        %v767 = vmul.f32 %v759, %v764
        %v768 = vmul.f32 %v760, %v763
        %771 = vst [vmem:[#allocation1] ss:$2 sm:$0xff] %v767
        %s772 = scalar_lea.vmem [#allocation1], 16
        %773 = vst [vmem:[%s772] ss:$2 sm:$0xff] %v768
        %v774 = vld.sshfl [vmem:[#allocation1] sm:$0xff pattern:$0x75316420]
        %v775 = vld.sshfl [vmem:[#allocation1 + $0x8] sm:$0xff pattern:$0x75316420]
        %v776 = vld.sshfl [vmem:[#allocation1 + $0x10] sm:$0xff pattern:$0x75316420]
        %777 = vrot.lane.b32.xlu0 %v774, 113
        %v778 = vpop.permute.xlu0 %777
        %779 = vrot.lane.b32.xlu0 %v775, 113
        %v780 = vpop.permute.xlu0 %779
        %781 = vrot.lane.b32.xlu0 %v776, 113
        %v782 = vpop.permute.xlu0 %781
        %v783 = vsel %vm531, %v778, %v780
        %v784 = vsel %vm531, %v780, %v782
        %787 = vst [vmem:[#allocation3 + $0x80] sm:$0xf] %v783
        %788 = vst [vmem:[#allocation3 + $0x88] sm:$0xf] %v784
        %v789 = vld [vmem:[#allocation2 + $0x4] sm:$0xff]
        %v790 = vld [vmem:[#allocation2 + $0xc] sm:$0xf]
        %791 = vrot.lane.b32.xlu0 %v328, 16
        %v792 = vpop.permute.xlu0 %791
        %v793 = vrot.slane %v792, 4
        %v794 = vsel %vm519, %v793, %v792
        %v797 = vmul.f32 %v789, %v794
        %v798 = vmul.f32 %v790, %v793
        %s801 = scalar_lea.vmem [#allocation1], 1
        %802 = vst [vmem:[%s801] ss:$2 sm:$0xff] %v797
        %s803 = scalar_lea.vmem [#allocation1], 17
        %804 = vst [vmem:[%s803] ss:$2 sm:$0xff] %v798
        %v805 = vld.sshfl [vmem:[#allocation1] sm:$0xff pattern:$0x75316420]
        %v806 = vld.sshfl [vmem:[#allocation1 + $0x8] sm:$0xff pattern:$0x75316420]
        %v807 = vld.sshfl [vmem:[#allocation1 + $0x10] sm:$0xff pattern:$0x75316420]
        %808 = vrot.lane.b32.xlu0 %v805, 112
        %v809 = vpop.permute.xlu0 %808
        %810 = vrot.lane.b32.xlu0 %v806, 112
        %v811 = vpop.permute.xlu0 %810
        %812 = vrot.lane.b32.xlu0 %v807, 112
        %v813 = vpop.permute.xlu0 %812
        %v814 = vsel %vm498, %v809, %v811
        %v815 = vsel %vm498, %v811, %v813
        %818 = vst [vmem:[#allocation3 + $0x80] sm:$0xf0] %v814
        %819 = vst [vmem:[#allocation3 + $0x88] sm:$0xf0] %v815
        %v820 = vld [vmem:[#allocation2 + $0x4] sm:$0xff]
        %v821 = vld [vmem:[#allocation2 + $0xc] sm:$0xf]
        %822 = vrot.lane.b32.xlu0 %v362, 17
        %v823 = vpop.permute.xlu0 %822
        %v824 = vrot.slane %v823, 4
        %v825 = vsel %vm486, %v824, %v823
        %v828 = vmul.f32 %v820, %v825
        %v829 = vmul.f32 %v821, %v824
        %832 = vst [vmem:[#allocation1] ss:$2 sm:$0xff] %v828
        %s833 = scalar_lea.vmem [#allocation1], 16
        %834 = vst [vmem:[%s833] ss:$2 sm:$0xff] %v829
        %v835 = vld.sshfl [vmem:[#allocation1] sm:$0xff pattern:$0x75316420]
        %v836 = vld.sshfl [vmem:[#allocation1 + $0x8] sm:$0xff pattern:$0x75316420]
        %v837 = vld.sshfl [vmem:[#allocation1 + $0x10] sm:$0xff pattern:$0x75316420]
        %838 = vrot.lane.b32.xlu0 %v835, 111
        %v839 = vpop.permute.xlu0 %838
        %840 = vrot.lane.b32.xlu0 %v836, 111
        %v841 = vpop.permute.xlu0 %840
        %842 = vrot.lane.b32.xlu0 %v837, 111
        %v843 = vpop.permute.xlu0 %842
        %v844 = vsel %vm466, %v839, %v841
        %v845 = vsel %vm466, %v841, %v843
        %848 = vst [vmem:[#allocation3 + $0x90] sm:$0xf] %v844
        %849 = vst [vmem:[#allocation3 + $0x98] sm:$0xf] %v845
        %v850 = vld [vmem:[#allocation2 + $0x4] sm:$0xff]
        %v851 = vld [vmem:[#allocation2 + $0xc] sm:$0xf]
        %852 = vrot.lane.b32.xlu0 %v397, 18
        %v853 = vpop.permute.xlu0 %852
        %v854 = vrot.slane %v853, 4
        %v855 = vsel %vm454, %v854, %v853
        %v858 = vmul.f32 %v850, %v855
        %v859 = vmul.f32 %v851, %v854
        %s862 = scalar_lea.vmem [#allocation1], 1
        %863 = vst [vmem:[%s862] ss:$2 sm:$0xff] %v858
        %s864 = scalar_lea.vmem [#allocation1], 17
        %865 = vst [vmem:[%s864] ss:$2 sm:$0xff] %v859
        %v866 = vld.sshfl [vmem:[#allocation1] sm:$0xff pattern:$0x75316420]
        %v867 = vld.sshfl [vmem:[#allocation1 + $0x8] sm:$0xff pattern:$0x75316420]
        %v868 = vld.sshfl [vmem:[#allocation1 + $0x10] sm:$0xff pattern:$0x75316420]
        %869 = vrot.lane.b32.xlu0 %v866, 110
        %v870 = vpop.permute.xlu0 %869
        %871 = vrot.lane.b32.xlu0 %v867, 110
        %v872 = vpop.permute.xlu0 %871
        %873 = vrot.lane.b32.xlu0 %v868, 110
        %v874 = vpop.permute.xlu0 %873
        %v875 = vsel %vm433, %v870, %v872
        %v876 = vsel %vm433, %v872, %v874
        %879 = vst [vmem:[#allocation3 + $0x90] sm:$0xf0] %v875
        %880 = vst [vmem:[#allocation3 + $0x98] sm:$0xf0] %v876
        %v881 = vld [vmem:[#allocation2 + $0x4] sm:$0xff]
        %v882 = vld [vmem:[#allocation2 + $0xc] sm:$0xf]
        %883 = vrot.lane.b32.xlu0 %v259, 30
        %v884 = vpop.permute.xlu0 %883
        %v885 = vrot.slane %v884, 4
        %v886 = vsel %vm421, %v885, %v884
        %v889 = vmul.f32 %v881, %v886
        %v890 = vmul.f32 %v882, %v885
        %893 = vst [vmem:[#allocation1] ss:$2 sm:$0xff] %v889
        %s894 = scalar_lea.vmem [#allocation1], 16
        %895 = vst [vmem:[%s894] ss:$2 sm:$0xff] %v890
        %v896 = vld.sshfl [vmem:[#allocation1] sm:$0xff pattern:$0x75316420]
        %v897 = vld.sshfl [vmem:[#allocation1 + $0x8] sm:$0xff pattern:$0x75316420]
        %v898 = vld.sshfl [vmem:[#allocation1 + $0x10] sm:$0xff pattern:$0x75316420]
        %899 = vrot.lane.b32.xlu0 %v896, 98
        %v900 = vpop.permute.xlu0 %899
        %901 = vrot.lane.b32.xlu0 %v897, 98
        %v902 = vpop.permute.xlu0 %901
        %903 = vrot.lane.b32.xlu0 %v898, 98
        %v904 = vpop.permute.xlu0 %903
        %v905 = vsel %vm401, %v900, %v902
        %v906 = vsel %vm401, %v902, %v904
        %909 = vst [vmem:[#allocation3 + $0xa0] sm:$0xf] %v905
        %910 = vst [vmem:[#allocation3 + $0xa8] sm:$0xf] %v906
        %v911 = vld [vmem:[#allocation2 + $0x4] sm:$0xff]
        %v912 = vld [vmem:[#allocation2 + $0xc] sm:$0xf]
        %913 = vrot.lane.b32.xlu0 %v293, 31
        %v914 = vpop.permute.xlu0 %913
        %v915 = vrot.slane %v914, 4
        %v916 = vsel %vm387, %v915, %v914
        %v919 = vmul.f32 %v911, %v916
        %v920 = vmul.f32 %v912, %v915
        %s923 = scalar_lea.vmem [#allocation1], 1
        %924 = vst [vmem:[%s923] ss:$2 sm:$0xff] %v919
        %s925 = scalar_lea.vmem [#allocation1], 17
        %926 = vst [vmem:[%s925] ss:$2 sm:$0xff] %v920
        %v927 = vld.sshfl [vmem:[#allocation1] sm:$0xff pattern:$0x75316420]
        %v928 = vld.sshfl [vmem:[#allocation1 + $0x8] sm:$0xff pattern:$0x75316420]
        %v929 = vld.sshfl [vmem:[#allocation1 + $0x10] sm:$0xff pattern:$0x75316420]
        %930 = vrot.lane.b32.xlu0 %v927, 97
        %v931 = vpop.permute.xlu0 %930
        %932 = vrot.lane.b32.xlu0 %v928, 97
        %v933 = vpop.permute.xlu0 %932
        %934 = vrot.lane.b32.xlu0 %v929, 97
        %v935 = vpop.permute.xlu0 %934
        %v936 = vsel %vm366, %v931, %v933
        %v937 = vsel %vm366, %v933, %v935
        %940 = vst [vmem:[#allocation3 + $0xa0] sm:$0xf0] %v936
        %941 = vst [vmem:[#allocation3 + $0xa8] sm:$0xf0] %v937
        %v942 = vld [vmem:[#allocation2 + $0x4] sm:$0xff]
        %v943 = vld [vmem:[#allocation2 + $0xc] sm:$0xf]
        %944 = vrot.lane.b32.xlu0 %v328, 32
        %v945 = vpop.permute.xlu0 %944
        %v946 = vrot.slane %v945, 4
        %v947 = vsel %vm352, %v946, %v945
        %v950 = vmul.f32 %v942, %v947
        %v951 = vmul.f32 %v943, %v946
        %954 = vst [vmem:[#allocation1] ss:$2 sm:$0xff] %v950
        %s955 = scalar_lea.vmem [#allocation1], 16
        %956 = vst [vmem:[%s955] ss:$2 sm:$0xff] %v951
        %v957 = vld.sshfl [vmem:[#allocation1] sm:$0xff pattern:$0x75316420]
        %v958 = vld.sshfl [vmem:[#allocation1 + $0x8] sm:$0xff pattern:$0x75316420]
        %v959 = vld.sshfl [vmem:[#allocation1 + $0x10] sm:$0xff pattern:$0x75316420]
        %960 = vrot.lane.b32.xlu0 %v957, 96
        %v961 = vpop.permute.xlu0 %960
        %962 = vrot.lane.b32.xlu0 %v958, 96
        %v963 = vpop.permute.xlu0 %962
        %964 = vrot.lane.b32.xlu0 %v959, 96
        %v965 = vpop.permute.xlu0 %964
        %v966 = vsel %vm332, %v961, %v963
        %v967 = vsel %vm332, %v963, %v965
        %970 = vst [vmem:[#allocation3 + $0xb0] sm:$0xf] %v966
        %971 = vst [vmem:[#allocation3 + $0xb8] sm:$0xf] %v967
        %v972 = vld [vmem:[#allocation2 + $0x4] sm:$0xff]
        %v973 = vld [vmem:[#allocation2 + $0xc] sm:$0xf]
        %974 = vrot.lane.b32.xlu0 %v362, 33
        %v975 = vpop.permute.xlu0 %974
        %v976 = vrot.slane %v975, 4
        %v977 = vsel %vm318, %v976, %v975
        %v980 = vmul.f32 %v972, %v977
        %v981 = vmul.f32 %v973, %v976
        %s984 = scalar_lea.vmem [#allocation1], 1
        %985 = vst [vmem:[%s984] ss:$2 sm:$0xff] %v980
        %s986 = scalar_lea.vmem [#allocation1], 17
        %987 = vst [vmem:[%s986] ss:$2 sm:$0xff] %v981
        %v988 = vld.sshfl [vmem:[#allocation1] sm:$0xff pattern:$0x75316420]
        %v989 = vld.sshfl [vmem:[#allocation1 + $0x8] sm:$0xff pattern:$0x75316420]
        %v990 = vld.sshfl [vmem:[#allocation1 + $0x10] sm:$0xff pattern:$0x75316420]
        %991 = vrot.lane.b32.xlu0 %v988, 95
        %v992 = vpop.permute.xlu0 %991
        %993 = vrot.lane.b32.xlu0 %v989, 95
        %v994 = vpop.permute.xlu0 %993
        %995 = vrot.lane.b32.xlu0 %v990, 95
        %v996 = vpop.permute.xlu0 %995
        %v997 = vsel %vm297, %v992, %v994
        %v998 = vsel %vm297, %v994, %v996
        %1001 = vst [vmem:[#allocation3 + $0xb0] sm:$0xf0] %v997
        %1002 = vst [vmem:[#allocation3 + $0xb8] sm:$0xf0] %v998
        %v1003 = vld [vmem:[#allocation2 + $0x4] sm:$0xff]
        %v1004 = vld [vmem:[#allocation2 + $0xc] sm:$0xf]
        %1005 = vrot.lane.b32.xlu0 %v397, 34
        %v1006 = vpop.permute.xlu0 %1005
        %v1007 = vrot.slane %v1006, 4
        %v1008 = vsel %vm283, %v1007, %v1006
        %v1011 = vmul.f32 %v1003, %v1008
        %v1012 = vmul.f32 %v1004, %v1007
        %1015 = vst [vmem:[#allocation1] ss:$2 sm:$0xff] %v1011
        %s1016 = scalar_lea.vmem [#allocation1], 16
        %1017 = vst [vmem:[%s1016] ss:$2 sm:$0xff] %v1012
        %v1018 = vld.sshfl [vmem:[#allocation1] sm:$0xff pattern:$0x75316420]
        %v1019 = vld.sshfl [vmem:[#allocation1 + $0x8] sm:$0xff pattern:$0x75316420]
        %v1020 = vld.sshfl [vmem:[#allocation1 + $0x10] sm:$0xff pattern:$0x75316420]
        %1021 = vrot.lane.b32.xlu0 %v1018, 94
        %v1022 = vpop.permute.xlu0 %1021
        %1023 = vrot.lane.b32.xlu0 %v1019, 94
        %v1024 = vpop.permute.xlu0 %1023
        %1025 = vrot.lane.b32.xlu0 %v1020, 94
        %v1026 = vpop.permute.xlu0 %1025
        %v1027 = vsel %vm263, %v1022, %v1024
        %v1028 = vsel %vm263, %v1024, %v1026
        %1031 = vst [vmem:[#allocation3 + $0xc0] sm:$0xf] %v1027
        %1032 = vst [vmem:[#allocation3 + $0xc8] sm:$0xf] %v1028
        %v1033 = vld [vmem:[#allocation7] sm:$0xff]
        %v1034 = vld [vmem:[#allocation3] sm:$0xff]
        %v1035 = vld [vmem:[#allocation3 + $0x8] sm:$0xff]
        %v1036 = vld [vmem:[#allocation3 + $0x10] sm:$0xff]
        %v1037 = vld [vmem:[#allocation3 + $0x18] sm:$0xff]
        %v1038 = vld [vmem:[#allocation3 + $0x20] sm:$0xff]
        %v1039 = vld [vmem:[#allocation3 + $0x28] sm:$0xff]
        %v1040 = vld [vmem:[#allocation3 + $0x30] sm:$0xff]
        %v1041 = vld [vmem:[#allocation3 + $0x38] sm:$0xff]
        %v1042 = vld [vmem:[#allocation3 + $0x40] sm:$0xff]
        %v1043 = vld [vmem:[#allocation3 + $0x48] sm:$0xff]
        %v1044 = vld [vmem:[#allocation3 + $0x50] sm:$0xff]
        %v1045 = vld [vmem:[#allocation3 + $0x58] sm:$0xff]
        %v1046 = vld [vmem:[#allocation3 + $0x60] sm:$0xff]
        %v1047 = vld [vmem:[#allocation3 + $0x68] sm:$0xff]
        %v1048 = vld [vmem:[#allocation3 + $0x70] sm:$0xff]
        %v1049 = vld [vmem:[#allocation3 + $0x78] sm:$0xff]
        %v1050 = vld [vmem:[#allocation3 + $0x80] sm:$0xff]
        %v1051 = vld [vmem:[#allocation3 + $0x88] sm:$0xff]
        %v1052 = vld [vmem:[#allocation3 + $0x90] sm:$0xff]
        %v1053 = vld [vmem:[#allocation3 + $0x98] sm:$0xff]
        %v1054 = vld [vmem:[#allocation3 + $0xa0] sm:$0xff]
        %v1055 = vld [vmem:[#allocation3 + $0xa8] sm:$0xff]
        %v1056 = vld [vmem:[#allocation3 + $0xb0] sm:$0xff]
        %v1057 = vld [vmem:[#allocation3 + $0xb8] sm:$0xff]
        %v1058 = vld [vmem:[#allocation3 + $0xc0] sm:$0xff]
        %v1059 = vld [vmem:[#allocation3 + $0xc8] sm:$0xff]
        %v1060 = vld [vmem:[#allocation3 + $0xd0] sm:$0xff]
        %v1061 = vld [vmem:[#allocation3 + $0xd8] sm:$0xff]
        %v1062 = vld [vmem:[#allocation3 + $0xe0] sm:$0xff]
        %v1063 = vld [vmem:[#allocation3 + $0xe8] sm:$0xff]
        %v1064 = vld [vmem:[#allocation3 + $0xf0] sm:$0xff]
        %v1065 = vld [vmem:[#allocation3 + $0xf8] sm:$0xff]
        %1066 = vmatpush.msra.mxu0 %v1064
        %1067 = vmatpush.msra.mxu0 %v1062
        %1068 = vmatpush.msra.mxu0 %v1060
        %1069 = vmatpush.msra.mxu0 %v1058
        %1070 = vmatpush.msra.mxu0 %v1056
        %1071 = vmatpush.msra.mxu0 %v1054
        %1072 = vmatpush.msra.mxu0 %v1052
        %1073 = vmatpush.msra.mxu0 %v1050
        %1074 = vmatpush.msra.mxu0 %v1048
        %1075 = vmatpush.msra.mxu0 %v1046
        %1076 = vmatpush.msra.mxu0 %v1044
        %1077 = vmatpush.msra.mxu0 %v1042
        %1078 = vmatpush.msra.mxu0 %v1040
        %1079 = vmatpush.msra.mxu0 %v1038
        %1080 = vmatpush.msra.mxu0 %v1036
        %1081 = vmatpush.msra.mxu0 %v1034
        %1082 = vmatmul.f32.gmra.mxu0 %v1033
        %v1083 = vpop.f32.mrf.mxu0
        %v1084 = vadd.f32 0.0, %v1083
        %1085 = vdwg.mxu0
        %1086 = vmatpush.msra.mxu0 %v1065
        %1087 = vmatpush.msra.mxu0 %v1063
        %1088 = vmatpush.msra.mxu0 %v1061
        %1089 = vmatpush.msra.mxu0 %v1059
        %1090 = vmatpush.msra.mxu0 %v1057
        %1091 = vmatpush.msra.mxu0 %v1055
        %1092 = vmatpush.msra.mxu0 %v1053
        %1093 = vmatpush.msra.mxu0 %v1051
        %1094 = vmatpush.msra.mxu0 %v1049
        %1095 = vmatpush.msra.mxu0 %v1047
        %1096 = vmatpush.msra.mxu0 %v1045
        %1097 = vmatpush.msra.mxu0 %v1043
        %1098 = vmatpush.msra.mxu0 %v1041
        %1099 = vmatpush.msra.mxu0 %v1039
        %1100 = vmatpush.msra.mxu0 %v1037
        %1101 = vmatpush.msra.mxu0 %v1035
        %1102 = vmatmul.f32.gmra.mxu0 %v1033
        %v1103 = vpop.f32.mrf.mxu0
        %v1104 = vadd.f32 0.0, %v1103
        %1105 = vdwg.mxu0
        %1106 = vst [vmem:[%s217] sm:$0xff] %v1084
        %1107 = vst [vmem:[%s217 + $0x8] sm:$0xff] %v1104
        %s1108 = sand.u32 %s97, 1
        %s1109 = scalar_lea.sflag [#allocation6], %s1108
        %s1110 = sand.u32 %s97, 1
        %s1111 = smul.addr %s1110, 16
        %s1112 = scalar_lea.vmem [#allocation10], %s1111
        // Predicated region
        $region45: #{tpu_custom_call.1} parent=31 // pred_check
          %p1113 = pneg %p107
        $region46: #{tpu_custom_call.1} parent=31 // pred_check_branch
          %1115 = sbr.rel (%p1113) target = $region48
        $region47: #{tpu_custom_call.1} parent=31 // pred_region
          %1117 = vsyncadd %s1109, 0
          %s1118 = smul.addr %s21, 2
          %s1119 = smul.addr %s1118, 8
          %s1120 = scalar_lea.hbm %s3, %s1119
          %s1122 = sshll.u32 %s1112, 4
          %s1123 = int_to_ptr.vmem [resolvable:$true] %s1122
          %s1124 = sshll.u32 %s1120, 4
          %s1125 = int_to_ptr.hbm [resolvable:$true] %s1124
          %1127 = dma.vmem_to_hbm [thread:$0]  %s1123, 256, %s1125, %s1109
        $region48: #{tpu_custom_call.1} parent=31 // pred_fallthru
          _
      $region32: #{tpu_custom_call.1} parent=5 // pred_fallthru
        _
      %p1128 = scmp.le.s32.totalorder 2, %s16
      // Predicated region
      $region49: #{tpu_custom_call.1} parent=5 // pred_check
        %p1129 = pneg %p1128
      $region50: #{tpu_custom_call.1} parent=5 // pred_check_branch
        %1131 = sbr.rel (%p1129) target = $region52
      $region51: #{tpu_custom_call.1} parent=5 // pred_region
        %s1132 = ssub.s32 %s16, 2
        // Predicated region
        $region53: #{tpu_custom_call.1} parent=51 // pred_check
          %p1133 = pneg %p113
        $region54: #{tpu_custom_call.1} parent=51 // pred_check_branch
          %1135 = sbr.rel (%p1133) target = $region56
        $region55: #{tpu_custom_call.1} parent=51 // pred_region
          %s1136 = sand.u32 %s98, 1
          %s1137 = scalar_lea.sflag [#allocation6], %s1136
          %s1138 = sand.u32 %s98, 1
          %s1139 = smul.addr %s1138, 16
          %s1140 = scalar_lea.vmem [#allocation10], %s1139
          %1142 = dma.done %s1137, 256
        $region56: #{tpu_custom_call.1} parent=51 // pred_fallthru
          _
      $region52: #{tpu_custom_call.1} parent=5 // pred_fallthru
        _
    $region6: #{tpu_custom_call.1} parent=1 // loop_footer
      %s20 = sadd.s32 1, %s16
    $region7: #{tpu_custom_call.1} parent=1 // loop_footer_branch
      %15 = sbr.rel target = $region3
    $region8: #{tpu_custom_call.1} parent=1 // loop_exit
      _
    %1143 = vsyncpa [#allocation5], 1
    %s1144 = scalar_lea.sflag [#allocation5], 1
    %1145 = vsyncpa %s1144, 1
    %1146 = vsyncpa [#allocation8], 1
    %1147 = vsyncpa [#allocation6], 1
    %s1148 = scalar_lea.sflag [#allocation6], 1
    %1149 = vsyncpa %s1148, 1

</llo_original>
